<compile_context>
chip_gen: v5e
topology: v5e:2x2
jax: 0.10.0
libtpu: 0.0.40
codegen_flags: <defaults>
</compile_context>

<pallas_src>
import functools
import math

import jax
import jax.numpy as jnp
from jax.experimental import pallas as pl
from jax.experimental.pallas import tpu as pltpu

# ----------------------------- config ---------------------------------------
NUM_EMBEDDINGS = 100        # config.num_embeddings
POSITION_EMBEDDINGS = 64    # config.position_embeddings
D_MODEL = 32                # config.d_model
NUM_HEADS = 4               # config.num_heads
HEAD_DIM = D_MODEL // NUM_HEADS
NUM_LAYERS = 2              # config.num_layers
D_OUT = 16                  # config.d_out
D_FF = 4 * D_MODEL          # dim_feedforward = d_model * 4
LN_EPS = 1e-5               # nn.LayerNorm default


# ----------------------------- kernel helpers --------------------------------
def _layernorm(x, w, b):
    mu = jnp.mean(x, axis=-1, keepdims=True)
    var = jnp.mean((x - mu) ** 2, axis=-1, keepdims=True)
    return (x - mu) * jax.lax.rsqrt(var + LN_EPS) * w + b


def _attention(q2, k2, v2, mask_dh, mask_hd, b, t):
    """Multi-head attention over the `b` axis with `t` as the attention batch.

    q2/k2/v2: (b*t, D) slabs (b-major rows); q2 already carries 1/sqrt(hd).
    Head grouping along the lane (D) axis is expressed with (D,H)/(H,D) 0/1
    masks so the lane dimension is never sliced, reshaped or concatenated.
    All reshapes below only split/merge leading / 8-aligned sublane dims.
    """
    q3 = q2.reshape(b, t, D_MODEL)
    k3 = k2.reshape(b, t, D_MODEL)
    v3 = v2.reshape(b, t, D_MODEL)

    # Per-head scores for every (query i, key j) pair, all t and heads at once.
    prod = q3[:, None, :, :] * k3[None, :, :, :]                      # (b, b, t, D)
    s = jnp.dot(prod.reshape(b * b * t, D_MODEL), mask_dh,
                preferred_element_type=jnp.float32)                   # (b*b*t, H)
    s = s.reshape(b, b, t, NUM_HEADS)

    # Softmax over the key axis (axis=1).
    s = s - jnp.max(s, axis=1, keepdims=True)
    p = jnp.exp(s)
    p = p * pl.reciprocal(jnp.sum(p, axis=1, keepdims=True), approx=True)

    # Broadcast per-head probabilities across their head_dim lanes, weight V.
    p_full = jnp.dot(p.reshape(b * b * t, NUM_HEADS), mask_hd,
                     preferred_element_type=jnp.float32)              # (b*b*t, D)
    p_full = p_full.reshape(b, b, t, D_MODEL)
    out = jnp.sum(p_full * v3[None, :, :, :], axis=1)                 # (b, t, D)
    return out.reshape(b * t, D_MODEL)


# ----------------------------- fused kernel ----------------------------------
def decoder_kernel(x_ref,
                   w_sa_ref, b_sa_ref, wo_sa_ref, bo_sa_ref,
                   w_ca_ref, b_ca_ref, wo_ca_ref, bo_ca_ref,
                   w_ff1_ref, b_ff1_ref, w_ff2_ref, b_ff2_ref,
                   ln_w_ref, ln_b_ref,
                   w_out_ref, b_out_ref,
                   o_ref, *, b, t):
    """Whole forward after the embedding gather: L decoder layers + out Linear."""
    f32 = jnp.float32

    # Head-grouping masks, built once on the VPU (no transposes needed).
    d_i = jax.lax.broadcasted_iota(jnp.int32, (D_MODEL, NUM_HEADS), 0)
    h_i = jax.lax.broadcasted_iota(jnp.int32, (D_MODEL, NUM_HEADS), 1)
    lo_i = h_i * HEAD_DIM
    mask_dh = ((d_i >= lo_i) & (d_i < lo_i + HEAD_DIM)).astype(f32)   # (D, H)

    h_j = jax.lax.broadcasted_iota(jnp.int32, (NUM_HEADS, D_MODEL), 0)
    d_j = jax.lax.broadcasted_iota(jnp.int32, (NUM_HEADS, D_MODEL), 1)
    lo_j = h_j * HEAD_DIM
    mask_hd = ((d_j >= lo_j) & (d_j < lo_j + HEAD_DIM)).astype(f32)   # (H, D)

    # memory for cross-attention == initial embeddings (reference: w(x, x)).
    mem = x_ref[...].astype(f32)                                      # (b*t, D)
    x = mem

    for li in range(NUM_LAYERS):                     # unrolled (NUM_LAYERS = 2)
        # ---- self-attention block (post-norm) ----
        q = jnp.dot(x, w_sa_ref[li, 0], preferred_element_type=f32) + b_sa_ref[li, 0]
        k = jnp.dot(x, w_sa_ref[li, 1], preferred_element_type=f32) + b_sa_ref[li, 1]
        v = jnp.dot(x, w_sa_ref[li, 2], preferred_element_type=f32) + b_sa_ref[li, 2]
        a = _attention(q, k, v, mask_dh, mask_hd, b, t)
        a = jnp.dot(a, wo_sa_ref[li], preferred_element_type=f32) + bo_sa_ref[li]
        x = _layernorm(x + a, ln_w_ref[li, 0], ln_b_ref[li, 0])

        # ---- cross-attention block against the constant memory ----
        q = jnp.dot(x, w_ca_ref[li, 0], preferred_element_type=f32) + b_ca_ref[li, 0]
        k = jnp.dot(mem, w_ca_ref[li, 1], preferred_element_type=f32) + b_ca_ref[li, 1]
        v = jnp.dot(mem, w_ca_ref[li, 2], preferred_element_type=f32) + b_ca_ref[li, 2]
        a = _attention(q, k, v, mask_dh, mask_hd, b, t)
        a = jnp.dot(a, wo_ca_ref[li], preferred_element_type=f32) + bo_ca_ref[li]
        x = _layernorm(x + a, ln_w_ref[li, 1], ln_b_ref[li, 1])

        # ---- feed-forward: Linear(D, 4D) -> ReLU -> Linear(4D, D) ----
        ff = jnp.dot(x, w_ff1_ref[li], preferred_element_type=f32) + b_ff1_ref[li]
        ff = jnp.maximum(ff, 0.0)
        ff = jnp.dot(ff, w_ff2_ref[li], preferred_element_type=f32) + b_ff2_ref[li]
        x = _layernorm(x + ff, ln_w_ref[li, 2], ln_b_ref[li, 2])

    # ---- final output projection self.o ----
    out = jnp.dot(x, w_out_ref[...], preferred_element_type=f32) + b_out_ref[...]
    o_ref[...] = out.reshape(b, t, D_OUT).astype(o_ref.dtype)


# ----------------------------- params ----------------------------------------
def init_torch_like_params(key):
    """Deterministic synthetic parameters matching the PyTorch module shapes."""
    def nrm(k, shape, scale=0.02):
        return scale * jax.random.normal(k, shape, dtype=jnp.float32)

    keys = jax.random.split(key, 4 + NUM_LAYERS)
    tok_emb = nrm(keys[0], (NUM_EMBEDDINGS, D_MODEL), 0.05)
    pos_emb = nrm(keys[1], (POSITION_EMBEDDINGS, D_MODEL), 0.05)

    layers = []
    for li in range(NUM_LAYERS):
        lk = jax.random.split(keys[4 + li], 10)
        layers.append(dict(
            sa_in_w=nrm(lk[0], (3 * D_MODEL, D_MODEL)),   # self_attn.in_proj_weight
            sa_in_b=nrm(lk[1], (3 * D_MODEL,)),           # self_attn.in_proj_bias
            sa_out_w=nrm(lk[2], (D_MODEL, D_MODEL)),      # self_attn.out_proj.weight
            sa_out_b=jnp.zeros((D_MODEL,), jnp.float32),
            ca_in_w=nrm(lk[3], (3 * D_MODEL, D_MODEL)),   # multihead_attn.in_proj_weight
            ca_in_b=nrm(lk[4], (3 * D_MODEL,)),
            ca_out_w=nrm(lk[5], (D_MODEL, D_MODEL)),
            ca_out_b=jnp.zeros((D_MODEL,), jnp.float32),
            ff1_w=nrm(lk[6], (D_FF, D_MODEL)),            # linear1.weight
            ff1_b=nrm(lk[7], (D_FF,)),
            ff2_w=nrm(lk[8], (D_MODEL, D_FF)),            # linear2.weight
            ff2_b=nrm(lk[9], (D_MODEL,)),
            n1_w=jnp.ones((D_MODEL,), jnp.float32), n1_b=jnp.zeros((D_MODEL,), jnp.float32),
            n2_w=jnp.ones((D_MODEL,), jnp.float32), n2_b=jnp.zeros((D_MODEL,), jnp.float32),
            n3_w=jnp.ones((D_MODEL,), jnp.float32), n3_b=jnp.zeros((D_MODEL,), jnp.float32),
        ))

    w_out = nrm(keys[2], (D_OUT, D_MODEL))                # self.o.weight
    b_out = nrm(keys[3], (D_OUT,))                        # self.o.bias
    return tok_emb, pos_emb, layers, (w_out, b_out)


def pack_params(params):
    """One-time host-side repack for the fused kernel: transpose weights for
    x @ W layout, split fused qkv projections (so the kernel only indexes
    leading dims, never lane offsets), fold 1/sqrt(head_dim) into q."""
    tok_emb, pos_emb, layers, (w_out, b_out) = params
    scale = 1.0 / math.sqrt(HEAD_DIM)

    def split_qkv(w, bvec):
        wq, wk, wv = w[:D_MODEL], w[D_MODEL:2 * D_MODEL], w[2 * D_MODEL:]
        bq, bk, bv = bvec[:D_MODEL], bvec[D_MODEL:2 * D_MODEL], bvec[2 * D_MODEL:]
        w3 = jnp.stack([(wq * scale).T, wk.T, wv.T])              # (3, D, D)
        b3 = jnp.stack([bq * scale, bk, bv])[:, None, :]          # (3, 1, D)
        return w3, b3

    w_sa, b_sa, wo_sa, bo_sa = [], [], [], []
    w_ca, b_ca, wo_ca, bo_ca = [], [], [], []
    w_ff1, b_ff1, w_ff2, b_ff2 = [], [], [], []
    ln_w, ln_b = [], []
    for L in layers:
        w3, b3 = split_qkv(L['sa_in_w'], L['sa_in_b'])
        w_sa.append(w3); b_sa.append(b3)
        wo_sa.append(L['sa_out_w'].T); bo_sa.append(L['sa_out_b'][None, :])
        w3, b3 = split_qkv(L['ca_in_w'], L['ca_in_b'])
        w_ca.append(w3); b_ca.append(b3)
        wo_ca.append(L['ca_out_w'].T); bo_ca.append(L['ca_out_b'][None, :])
        w_ff1.append(L['ff1_w'].T); b_ff1.append(L['ff1_b'][None, :])
        w_ff2.append(L['ff2_w'].T); b_ff2.append(L['ff2_b'][None, :])
        ln_w.append(jnp.stack([L['n1_w'], L['n2_w'], L['n3_w']])[:, None, :])
        ln_b.append(jnp.stack([L['n1_b'], L['n2_b'], L['n3_b']])[:, None, :])

    st = lambda xs: jnp.stack(xs, axis=0)
    packed = (st(w_sa), st(b_sa), st(wo_sa), st(bo_sa),
              st(w_ca), st(b_ca), st(wo_ca), st(bo_ca),
              st(w_ff1), st(b_ff1), st(w_ff2), st(b_ff2),
              st(ln_w), st(ln_b),
              w_out.T, b_out[None, :])
    return tok_emb, pos_emb, packed


# ----------------------------- forward ----------------------------------------
def _vmem():
    return pl.BlockSpec(memory_space=pltpu.MemorySpace.VMEM)


def decoder_forward(ids, tok_emb, pos_emb, packed, hidden_states=None):
    b, t = ids.shape
    if hidden_states is None:
        # Faithful to the PyTorch reference: memory=None is passed to
        # nn.TransformerDecoder and crashes inside nn.MultiheadAttention.
        raise ValueError("Decoder.forward requires hidden_states; the "
                         "hidden_states=None path is undefined in the reference.")
    # Embedding gather + positional add (plain XLA glue); everything after this
    # runs inside a single fused Pallas kernel.
    # TODO(synk): the gather itself could also be moved in-kernel via scalar
    # prefetch of `ids`, but the win is marginal at this size.
    x = tok_emb[ids] + pos_emb[:t][None, :, :]            # (b, t, D)
    x2 = x.reshape(b * t, D_MODEL)                        # batch collapsed into M

    kernel = functools.partial(decoder_kernel, b=b, t=t)
    out = pl.pallas_call(
        kernel,
        out_shape=jax.ShapeDtypeStruct((b, t, D_OUT), jnp.float32),
        in_specs=[_vmem()] * (1 + len(packed)),
        out_specs=_vmem(),
    )(x2, *packed)
    return out                                            # (b, t, D_OUT)


decoder_forward_jit = jax.jit(decoder_forward)


# ----------------------------- main -------------------------------------------
if __name__ == "__main__":
    key = jax.random.PRNGKey(0)
    k_ids, k_params = jax.random.split(key)
    B, T = 2, 8
    ids = jax.random.randint(k_ids, (B, T), 0, NUM_EMBEDDINGS, dtype=jnp.int32)

    raw_params = init_torch_like_params(k_params)
    tok_emb, pos_emb, packed = pack_params(raw_params)

    # The reference only checks hidden_states for None (memory is x itself),
    # so any non-None value selects the defined code path.
    hidden = jnp.zeros((B, T, D_MODEL), jnp.float32)

    out = decoder_forward_jit(ids, tok_emb, pos_emb, packed, hidden_states=hidden)
    out = jax.block_until_ready(out)

    assert out.shape == (B, T, D_OUT), out.shape
    assert out.dtype == jnp.float32
    assert bool(jnp.all(jnp.isfinite(out)))
    print("KERNEL_OK")
</pallas_src>

<mosaic_0001>
module attributes {stable_mosaic.version = 11 : i64} {
  func.func @decoder_kernel(%arg0: memref<16x32xf32, #tpu.memory_space<vmem>>, %arg1: memref<2x3x32x32xf32, #tpu.memory_space<vmem>>, %arg2: memref<2x3x1x32xf32, #tpu.memory_space<vmem>>, %arg3: memref<2x32x32xf32, #tpu.memory_space<vmem>>, %arg4: memref<2x1x32xf32, #tpu.memory_space<vmem>>, %arg5: memref<2x3x32x32xf32, #tpu.memory_space<vmem>>, %arg6: memref<2x3x1x32xf32, #tpu.memory_space<vmem>>, %arg7: memref<2x32x32xf32, #tpu.memory_space<vmem>>, %arg8: memref<2x1x32xf32, #tpu.memory_space<vmem>>, %arg9: memref<2x32x128xf32, #tpu.memory_space<vmem>>, %arg10: memref<2x1x128xf32, #tpu.memory_space<vmem>>, %arg11: memref<2x128x32xf32, #tpu.memory_space<vmem>>, %arg12: memref<2x1x32xf32, #tpu.memory_space<vmem>>, %arg13: memref<2x3x1x32xf32, #tpu.memory_space<vmem>>, %arg14: memref<2x3x1x32xf32, #tpu.memory_space<vmem>>, %arg15: memref<32x16xf32, #tpu.memory_space<vmem>>, %arg16: memref<1x16xf32, #tpu.memory_space<vmem>>, %arg17: memref<2x8x16xf32, #tpu.memory_space<vmem>>) attributes {dimension_semantics = [], scalar_prefetch = 0 : i64, scratch_operands = 0 : i64, tpu.core_type = #tpu.core_type<tc>} {
    %0 = tpu.iota {dimensions = array<i32: 0>} : vector<32x4xi32>
    %1 = tpu.iota {dimensions = array<i32: 1>} : vector<32x4xi32>
    %c8_i32 = arith.constant 8 : i32
    %2 = vector.broadcast %c8_i32 : i32 to vector<32x4xi32>
    %3 = arith.muli %1, %2 : vector<32x4xi32>
    %4 = arith.cmpi sge, %0, %3 : vector<32x4xi32>
    %c8_i32_0 = arith.constant 8 : i32
    %5 = vector.broadcast %c8_i32_0 : i32 to vector<32x4xi32>
    %6 = arith.addi %3, %5 : vector<32x4xi32>
    %7 = arith.cmpi slt, %0, %6 : vector<32x4xi32>
    %8 = arith.andi %4, %7 : vector<32x4xi1>
    %9 = arith.extui %8 : vector<32x4xi1> to vector<32x4xi32>
    %10 = arith.sitofp %9 : vector<32x4xi32> to vector<32x4xf32>
    %11 = tpu.iota {dimensions = array<i32: 0>} : vector<4x32xi32>
    %12 = tpu.iota {dimensions = array<i32: 1>} : vector<4x32xi32>
    %c8_i32_1 = arith.constant 8 : i32
    %13 = vector.broadcast %c8_i32_1 : i32 to vector<4x32xi32>
    %14 = arith.muli %11, %13 : vector<4x32xi32>
    %15 = arith.cmpi sge, %12, %14 : vector<4x32xi32>
    %c8_i32_2 = arith.constant 8 : i32
    %16 = vector.broadcast %c8_i32_2 : i32 to vector<4x32xi32>
    %17 = arith.addi %14, %16 : vector<4x32xi32>
    %18 = arith.cmpi slt, %12, %17 : vector<4x32xi32>
    %19 = arith.andi %15, %18 : vector<4x32xi1>
    %20 = arith.extui %19 : vector<4x32xi1> to vector<4x32xi32>
    %21 = arith.sitofp %20 : vector<4x32xi32> to vector<4x32xf32>
    %c0 = arith.constant 0 : index
    %c0_3 = arith.constant 0 : index
    %22 = vector.load %arg0[%c0, %c0_3] : memref<16x32xf32, #tpu.memory_space<vmem>>, vector<16x32xf32>
    %c0_4 = arith.constant 0 : index
    %c0_5 = arith.constant 0 : index
    %c0_6 = arith.constant 0 : index
    %c0_7 = arith.constant 0 : index
    %23 = vector.load %arg1[%c0_4, %c0_5, %c0_6, %c0_7] : memref<2x3x32x32xf32, #tpu.memory_space<vmem>>, vector<1x1x32x32xf32>
    %24 = vector.shape_cast %23 : vector<1x1x32x32xf32> to vector<32x32xf32>
    %cst = arith.constant dense<0.000000e+00> : vector<16x32xf32>
    %25 = tpu.matmul %22, %24, %cst {dimension_numbers = #tpu.dot_dimension_numbers<[1], [0], [0], [1], [0, 0, 1, 1], [], []>} : vector<16x32xf32>, vector<32x32xf32>, vector<16x32xf32> -> vector<16x32xf32>
    %c0_8 = arith.constant 0 : index
    %c0_9 = arith.constant 0 : index
    %c0_10 = arith.constant 0 : index
    %c0_11 = arith.constant 0 : index
    %26 = vector.load %arg2[%c0_8, %c0_9, %c0_10, %c0_11] : memref<2x3x1x32xf32, #tpu.memory_space<vmem>>, vector<1x1x1x32xf32>
    %27 = vector.shape_cast %26 : vector<1x1x1x32xf32> to vector<1x32xf32>
    %28 = vector.broadcast %27 : vector<1x32xf32> to vector<16x32xf32>
    %29 = arith.addf %25, %28 : vector<16x32xf32>
    %c0_12 = arith.constant 0 : index
    %c1 = arith.constant 1 : index
    %c0_13 = arith.constant 0 : index
    %c0_14 = arith.constant 0 : index
    %30 = vector.load %arg1[%c0_12, %c1, %c0_13, %c0_14] : memref<2x3x32x32xf32, #tpu.memory_space<vmem>>, vector<1x1x32x32xf32>
    %31 = vector.shape_cast %30 : vector<1x1x32x32xf32> to vector<32x32xf32>
    %cst_15 = arith.constant dense<0.000000e+00> : vector<16x32xf32>
    %32 = tpu.matmul %22, %31, %cst_15 {dimension_numbers = #tpu.dot_dimension_numbers<[1], [0], [0], [1], [0, 0, 1, 1], [], []>} : vector<16x32xf32>, vector<32x32xf32>, vector<16x32xf32> -> vector<16x32xf32>
    %c0_16 = arith.constant 0 : index
    %c1_17 = arith.constant 1 : index
    %c0_18 = arith.constant 0 : index
    %c0_19 = arith.constant 0 : index
    %33 = vector.load %arg2[%c0_16, %c1_17, %c0_18, %c0_19] : memref<2x3x1x32xf32, #tpu.memory_space<vmem>>, vector<1x1x1x32xf32>
    %34 = vector.shape_cast %33 : vector<1x1x1x32xf32> to vector<1x32xf32>
    %35 = vector.broadcast %34 : vector<1x32xf32> to vector<16x32xf32>
    %36 = arith.addf %32, %35 : vector<16x32xf32>
    %c0_20 = arith.constant 0 : index
    %c2 = arith.constant 2 : index
    %c0_21 = arith.constant 0 : index
    %c0_22 = arith.constant 0 : index
    %37 = vector.load %arg1[%c0_20, %c2, %c0_21, %c0_22] : memref<2x3x32x32xf32, #tpu.memory_space<vmem>>, vector<1x1x32x32xf32>
    %38 = vector.shape_cast %37 : vector<1x1x32x32xf32> to vector<32x32xf32>
    %cst_23 = arith.constant dense<0.000000e+00> : vector<16x32xf32>
    %39 = tpu.matmul %22, %38, %cst_23 {dimension_numbers = #tpu.dot_dimension_numbers<[1], [0], [0], [1], [0, 0, 1, 1], [], []>} : vector<16x32xf32>, vector<32x32xf32>, vector<16x32xf32> -> vector<16x32xf32>
    %c0_24 = arith.constant 0 : index
    %c2_25 = arith.constant 2 : index
    %c0_26 = arith.constant 0 : index
    %c0_27 = arith.constant 0 : index
    %40 = vector.load %arg2[%c0_24, %c2_25, %c0_26, %c0_27] : memref<2x3x1x32xf32, #tpu.memory_space<vmem>>, vector<1x1x1x32xf32>
    %41 = vector.shape_cast %40 : vector<1x1x1x32xf32> to vector<1x32xf32>
    %42 = vector.broadcast %41 : vector<1x32xf32> to vector<16x32xf32>
    %43 = arith.addf %39, %42 : vector<16x32xf32>
    %44 = vector.shape_cast %29 : vector<16x32xf32> to vector<2x8x32xf32>
    %45 = vector.shape_cast %36 : vector<16x32xf32> to vector<2x8x32xf32>
    %46 = vector.shape_cast %43 : vector<16x32xf32> to vector<2x8x32xf32>
    %47 = vector.shape_cast %44 : vector<2x8x32xf32> to vector<2x1x8x32xf32>
    %48 = vector.shape_cast %45 : vector<2x8x32xf32> to vector<1x2x8x32xf32>
    %49 = vector.broadcast %47 : vector<2x1x8x32xf32> to vector<2x2x8x32xf32>
    %50 = vector.broadcast %48 : vector<1x2x8x32xf32> to vector<2x2x8x32xf32>
    %51 = arith.mulf %49, %50 : vector<2x2x8x32xf32>
    %52 = vector.shape_cast %51 : vector<2x2x8x32xf32> to vector<32x32xf32>
    %cst_28 = arith.constant dense<0.000000e+00> : vector<32x4xf32>
    %53 = tpu.matmul %52, %10, %cst_28 {dimension_numbers = #tpu.dot_dimension_numbers<[1], [0], [0], [1], [0, 0, 1, 1], [], []>} : vector<32x32xf32>, vector<32x4xf32>, vector<32x4xf32> -> vector<32x4xf32>
    %54 = vector.shape_cast %53 : vector<32x4xf32> to vector<2x2x8x4xf32>
    %cst_29 = arith.constant dense<0xFF800000> : vector<2x8x4xf32>
    %55 = vector.multi_reduction <maximumf>, %54, %cst_29 [1] : vector<2x2x8x4xf32> to vector<2x8x4xf32>
    %56 = vector.shape_cast %55 : vector<2x8x4xf32> to vector<2x1x8x4xf32>
    %57 = vector.broadcast %56 : vector<2x1x8x4xf32> to vector<2x2x8x4xf32>
    %58 = arith.subf %54, %57 : vector<2x2x8x4xf32>
    %59 = math.exp %58 : vector<2x2x8x4xf32>
    %cst_30 = arith.constant dense<0.000000e+00> : vector<2x8x4xf32>
    %60 = vector.multi_reduction <add>, %59, %cst_30 [1] : vector<2x2x8x4xf32> to vector<2x8x4xf32>
    %61 = vector.shape_cast %60 : vector<2x8x4xf32> to vector<2x1x8x4xf32>
    %62 = tpu.reciprocal %61 {approx = true} : vector<2x1x8x4xf32> -> vector<2x1x8x4xf32>
    %63 = vector.broadcast %62 : vector<2x1x8x4xf32> to vector<2x2x8x4xf32>
    %64 = arith.mulf %59, %63 : vector<2x2x8x4xf32>
    %65 = vector.shape_cast %64 : vector<2x2x8x4xf32> to vector<32x4xf32>
    %cst_31 = arith.constant dense<0.000000e+00> : vector<32x32xf32>
    %66 = tpu.matmul %65, %21, %cst_31 {dimension_numbers = #tpu.dot_dimension_numbers<[1], [0], [0], [1], [0, 0, 1, 1], [], []>} : vector<32x4xf32>, vector<4x32xf32>, vector<32x32xf32> -> vector<32x32xf32>
    %67 = vector.shape_cast %66 : vector<32x32xf32> to vector<2x2x8x32xf32>
    %68 = vector.shape_cast %46 : vector<2x8x32xf32> to vector<1x2x8x32xf32>
    %69 = vector.broadcast %68 : vector<1x2x8x32xf32> to vector<2x2x8x32xf32>
    %70 = arith.mulf %67, %69 : vector<2x2x8x32xf32>
    %cst_32 = arith.constant dense<0.000000e+00> : vector<2x8x32xf32>
    %71 = vector.multi_reduction <add>, %70, %cst_32 [1] : vector<2x2x8x32xf32> to vector<2x8x32xf32>
    %72 = vector.shape_cast %71 : vector<2x8x32xf32> to vector<16x32xf32>
    %c0_33 = arith.constant 0 : index
    %c0_34 = arith.constant 0 : index
    %c0_35 = arith.constant 0 : index
    %73 = vector.load %arg3[%c0_33, %c0_34, %c0_35] : memref<2x32x32xf32, #tpu.memory_space<vmem>>, vector<1x32x32xf32>
    %74 = vector.shape_cast %73 : vector<1x32x32xf32> to vector<32x32xf32>
    %cst_36 = arith.constant dense<0.000000e+00> : vector<16x32xf32>
    %75 = tpu.matmul %72, %74, %cst_36 {dimension_numbers = #tpu.dot_dimension_numbers<[1], [0], [0], [1], [0, 0, 1, 1], [], []>} : vector<16x32xf32>, vector<32x32xf32>, vector<16x32xf32> -> vector<16x32xf32>
    %c0_37 = arith.constant 0 : index
    %c0_38 = arith.constant 0 : index
    %c0_39 = arith.constant 0 : index
    %76 = vector.load %arg4[%c0_37, %c0_38, %c0_39] : memref<2x1x32xf32, #tpu.memory_space<vmem>>, vector<1x1x32xf32>
    %77 = vector.shape_cast %76 : vector<1x1x32xf32> to vector<1x32xf32>
    %78 = vector.broadcast %77 : vector<1x32xf32> to vector<16x32xf32>
    %79 = arith.addf %75, %78 : vector<16x32xf32>
    %80 = arith.addf %22, %79 : vector<16x32xf32>
    %c0_40 = arith.constant 0 : index
    %c0_41 = arith.constant 0 : index
    %c0_42 = arith.constant 0 : index
    %c0_43 = arith.constant 0 : index
    %81 = vector.load %arg13[%c0_40, %c0_41, %c0_42, %c0_43] : memref<2x3x1x32xf32, #tpu.memory_space<vmem>>, vector<1x1x1x32xf32>
    %82 = vector.shape_cast %81 : vector<1x1x1x32xf32> to vector<1x32xf32>
    %c0_44 = arith.constant 0 : index
    %c0_45 = arith.constant 0 : index
    %c0_46 = arith.constant 0 : index
    %c0_47 = arith.constant 0 : index
    %83 = vector.load %arg14[%c0_44, %c0_45, %c0_46, %c0_47] : memref<2x3x1x32xf32, #tpu.memory_space<vmem>>, vector<1x1x1x32xf32>
    %84 = vector.shape_cast %83 : vector<1x1x1x32xf32> to vector<1x32xf32>
    %cst_48 = arith.constant dense<0.000000e+00> : vector<16xf32>
    %85 = vector.multi_reduction <add>, %80, %cst_48 [1] : vector<16x32xf32> to vector<16xf32>
    %86 = vector.shape_cast %85 : vector<16xf32> to vector<16x1xf32>
    %cst_49 = arith.constant 3.200000e+01 : f32
    %87 = vector.broadcast %cst_49 : f32 to vector<16x1xf32>
    %88 = arith.divf %86, %87 : vector<16x1xf32>
    %89 = vector.broadcast %88 : vector<16x1xf32> to vector<16x32xf32>
    %90 = arith.subf %80, %89 : vector<16x32xf32>
    %91 = arith.mulf %90, %90 : vector<16x32xf32>
    %cst_50 = arith.constant dense<0.000000e+00> : vector<16xf32>
    %92 = vector.multi_reduction <add>, %91, %cst_50 [1] : vector<16x32xf32> to vector<16xf32>
    %93 = vector.shape_cast %92 : vector<16xf32> to vector<16x1xf32>
    %cst_51 = arith.constant 3.200000e+01 : f32
    %94 = vector.broadcast %cst_51 : f32 to vector<16x1xf32>
    %95 = arith.divf %93, %94 : vector<16x1xf32>
    %96 = vector.broadcast %88 : vector<16x1xf32> to vector<16x32xf32>
    %97 = arith.subf %80, %96 : vector<16x32xf32>
    %cst_52 = arith.constant 9.99999974E-6 : f32
    %98 = vector.broadcast %cst_52 : f32 to vector<16x1xf32>
    %99 = arith.addf %95, %98 : vector<16x1xf32>
    %100 = math.rsqrt %99 : vector<16x1xf32>
    %101 = vector.broadcast %100 : vector<16x1xf32> to vector<16x32xf32>
    %102 = arith.mulf %97, %101 : vector<16x32xf32>
    %103 = vector.broadcast %82 : vector<1x32xf32> to vector<16x32xf32>
    %104 = arith.mulf %102, %103 : vector<16x32xf32>
    %105 = vector.broadcast %84 : vector<1x32xf32> to vector<16x32xf32>
    %106 = arith.addf %104, %105 : vector<16x32xf32>
    %c0_53 = arith.constant 0 : index
    %c0_54 = arith.constant 0 : index
    %c0_55 = arith.constant 0 : index
    %c0_56 = arith.constant 0 : index
    %107 = vector.load %arg5[%c0_53, %c0_54, %c0_55, %c0_56] : memref<2x3x32x32xf32, #tpu.memory_space<vmem>>, vector<1x1x32x32xf32>
    %108 = vector.shape_cast %107 : vector<1x1x32x32xf32> to vector<32x32xf32>
    %cst_57 = arith.constant dense<0.000000e+00> : vector<16x32xf32>
    %109 = tpu.matmul %106, %108, %cst_57 {dimension_numbers = #tpu.dot_dimension_numbers<[1], [0], [0], [1], [0, 0, 1, 1], [], []>} : vector<16x32xf32>, vector<32x32xf32>, vector<16x32xf32> -> vector<16x32xf32>
    %c0_58 = arith.constant 0 : index
    %c0_59 = arith.constant 0 : index
    %c0_60 = arith.constant 0 : index
    %c0_61 = arith.constant 0 : index
    %110 = vector.load %arg6[%c0_58, %c0_59, %c0_60, %c0_61] : memref<2x3x1x32xf32, #tpu.memory_space<vmem>>, vector<1x1x1x32xf32>
    %111 = vector.shape_cast %110 : vector<1x1x1x32xf32> to vector<1x32xf32>
    %112 = vector.broadcast %111 : vector<1x32xf32> to vector<16x32xf32>
    %113 = arith.addf %109, %112 : vector<16x32xf32>
    %c0_62 = arith.constant 0 : index
    %c1_63 = arith.constant 1 : index
    %c0_64 = arith.constant 0 : index
    %c0_65 = arith.constant 0 : index
    %114 = vector.load %arg5[%c0_62, %c1_63, %c0_64, %c0_65] : memref<2x3x32x32xf32, #tpu.memory_space<vmem>>, vector<1x1x32x32xf32>
    %115 = vector.shape_cast %114 : vector<1x1x32x32xf32> to vector<32x32xf32>
    %cst_66 = arith.constant dense<0.000000e+00> : vector<16x32xf32>
    %116 = tpu.matmul %22, %115, %cst_66 {dimension_numbers = #tpu.dot_dimension_numbers<[1], [0], [0], [1], [0, 0, 1, 1], [], []>} : vector<16x32xf32>, vector<32x32xf32>, vector<16x32xf32> -> vector<16x32xf32>
    %c0_67 = arith.constant 0 : index
    %c1_68 = arith.constant 1 : index
    %c0_69 = arith.constant 0 : index
    %c0_70 = arith.constant 0 : index
    %117 = vector.load %arg6[%c0_67, %c1_68, %c0_69, %c0_70] : memref<2x3x1x32xf32, #tpu.memory_space<vmem>>, vector<1x1x1x32xf32>
    %118 = vector.shape_cast %117 : vector<1x1x1x32xf32> to vector<1x32xf32>
    %119 = vector.broadcast %118 : vector<1x32xf32> to vector<16x32xf32>
    %120 = arith.addf %116, %119 : vector<16x32xf32>
    %c0_71 = arith.constant 0 : index
    %c2_72 = arith.constant 2 : index
    %c0_73 = arith.constant 0 : index
    %c0_74 = arith.constant 0 : index
    %121 = vector.load %arg5[%c0_71, %c2_72, %c0_73, %c0_74] : memref<2x3x32x32xf32, #tpu.memory_space<vmem>>, vector<1x1x32x32xf32>
    %122 = vector.shape_cast %121 : vector<1x1x32x32xf32> to vector<32x32xf32>
    %cst_75 = arith.constant dense<0.000000e+00> : vector<16x32xf32>
    %123 = tpu.matmul %22, %122, %cst_75 {dimension_numbers = #tpu.dot_dimension_numbers<[1], [0], [0], [1], [0, 0, 1, 1], [], []>} : vector<16x32xf32>, vector<32x32xf32>, vector<16x32xf32> -> vector<16x32xf32>
    %c0_76 = arith.constant 0 : index
    %c2_77 = arith.constant 2 : index
    %c0_78 = arith.constant 0 : index
    %c0_79 = arith.constant 0 : index
    %124 = vector.load %arg6[%c0_76, %c2_77, %c0_78, %c0_79] : memref<2x3x1x32xf32, #tpu.memory_space<vmem>>, vector<1x1x1x32xf32>
    %125 = vector.shape_cast %124 : vector<1x1x1x32xf32> to vector<1x32xf32>
    %126 = vector.broadcast %125 : vector<1x32xf32> to vector<16x32xf32>
    %127 = arith.addf %123, %126 : vector<16x32xf32>
    %128 = vector.shape_cast %113 : vector<16x32xf32> to vector<2x8x32xf32>
    %129 = vector.shape_cast %120 : vector<16x32xf32> to vector<2x8x32xf32>
    %130 = vector.shape_cast %127 : vector<16x32xf32> to vector<2x8x32xf32>
    %131 = vector.shape_cast %128 : vector<2x8x32xf32> to vector<2x1x8x32xf32>
    %132 = vector.shape_cast %129 : vector<2x8x32xf32> to vector<1x2x8x32xf32>
    %133 = vector.broadcast %131 : vector<2x1x8x32xf32> to vector<2x2x8x32xf32>
    %134 = vector.broadcast %132 : vector<1x2x8x32xf32> to vector<2x2x8x32xf32>
    %135 = arith.mulf %133, %134 : vector<2x2x8x32xf32>
    %136 = vector.shape_cast %135 : vector<2x2x8x32xf32> to vector<32x32xf32>
    %cst_80 = arith.constant dense<0.000000e+00> : vector<32x4xf32>
    %137 = tpu.matmul %136, %10, %cst_80 {dimension_numbers = #tpu.dot_dimension_numbers<[1], [0], [0], [1], [0, 0, 1, 1], [], []>} : vector<32x32xf32>, vector<32x4xf32>, vector<32x4xf32> -> vector<32x4xf32>
    %138 = vector.shape_cast %137 : vector<32x4xf32> to vector<2x2x8x4xf32>
    %cst_81 = arith.constant dense<0xFF800000> : vector<2x8x4xf32>
    %139 = vector.multi_reduction <maximumf>, %138, %cst_81 [1] : vector<2x2x8x4xf32> to vector<2x8x4xf32>
    %140 = vector.shape_cast %139 : vector<2x8x4xf32> to vector<2x1x8x4xf32>
    %141 = vector.broadcast %140 : vector<2x1x8x4xf32> to vector<2x2x8x4xf32>
    %142 = arith.subf %138, %141 : vector<2x2x8x4xf32>
    %143 = math.exp %142 : vector<2x2x8x4xf32>
    %cst_82 = arith.constant dense<0.000000e+00> : vector<2x8x4xf32>
    %144 = vector.multi_reduction <add>, %143, %cst_82 [1] : vector<2x2x8x4xf32> to vector<2x8x4xf32>
    %145 = vector.shape_cast %144 : vector<2x8x4xf32> to vector<2x1x8x4xf32>
    %146 = tpu.reciprocal %145 {approx = true} : vector<2x1x8x4xf32> -> vector<2x1x8x4xf32>
    %147 = vector.broadcast %146 : vector<2x1x8x4xf32> to vector<2x2x8x4xf32>
    %148 = arith.mulf %143, %147 : vector<2x2x8x4xf32>
    %149 = vector.shape_cast %148 : vector<2x2x8x4xf32> to vector<32x4xf32>
    %cst_83 = arith.constant dense<0.000000e+00> : vector<32x32xf32>
    %150 = tpu.matmul %149, %21, %cst_83 {dimension_numbers = #tpu.dot_dimension_numbers<[1], [0], [0], [1], [0, 0, 1, 1], [], []>} : vector<32x4xf32>, vector<4x32xf32>, vector<32x32xf32> -> vector<32x32xf32>
    %151 = vector.shape_cast %150 : vector<32x32xf32> to vector<2x2x8x32xf32>
    %152 = vector.shape_cast %130 : vector<2x8x32xf32> to vector<1x2x8x32xf32>
    %153 = vector.broadcast %152 : vector<1x2x8x32xf32> to vector<2x2x8x32xf32>
    %154 = arith.mulf %151, %153 : vector<2x2x8x32xf32>
    %cst_84 = arith.constant dense<0.000000e+00> : vector<2x8x32xf32>
    %155 = vector.multi_reduction <add>, %154, %cst_84 [1] : vector<2x2x8x32xf32> to vector<2x8x32xf32>
    %156 = vector.shape_cast %155 : vector<2x8x32xf32> to vector<16x32xf32>
    %c0_85 = arith.constant 0 : index
    %c0_86 = arith.constant 0 : index
    %c0_87 = arith.constant 0 : index
    %157 = vector.load %arg7[%c0_85, %c0_86, %c0_87] : memref<2x32x32xf32, #tpu.memory_space<vmem>>, vector<1x32x32xf32>
    %158 = vector.shape_cast %157 : vector<1x32x32xf32> to vector<32x32xf32>
    %cst_88 = arith.constant dense<0.000000e+00> : vector<16x32xf32>
    %159 = tpu.matmul %156, %158, %cst_88 {dimension_numbers = #tpu.dot_dimension_numbers<[1], [0], [0], [1], [0, 0, 1, 1], [], []>} : vector<16x32xf32>, vector<32x32xf32>, vector<16x32xf32> -> vector<16x32xf32>
    %c0_89 = arith.constant 0 : index
    %c0_90 = arith.constant 0 : index
    %c0_91 = arith.constant 0 : index
    %160 = vector.load %arg8[%c0_89, %c0_90, %c0_91] : memref<2x1x32xf32, #tpu.memory_space<vmem>>, vector<1x1x32xf32>
    %161 = vector.shape_cast %160 : vector<1x1x32xf32> to vector<1x32xf32>
    %162 = vector.broadcast %161 : vector<1x32xf32> to vector<16x32xf32>
    %163 = arith.addf %159, %162 : vector<16x32xf32>
    %164 = arith.addf %106, %163 : vector<16x32xf32>
    %c0_92 = arith.constant 0 : index
    %c1_93 = arith.constant 1 : index
    %c0_94 = arith.constant 0 : index
    %c0_95 = arith.constant 0 : index
    %165 = vector.load %arg13[%c0_92, %c1_93, %c0_94, %c0_95] : memref<2x3x1x32xf32, #tpu.memory_space<vmem>>, vector<1x1x1x32xf32>
    %166 = vector.shape_cast %165 : vector<1x1x1x32xf32> to vector<1x32xf32>
    %c0_96 = arith.constant 0 : index
    %c1_97 = arith.constant 1 : index
    %c0_98 = arith.constant 0 : index
    %c0_99 = arith.constant 0 : index
    %167 = vector.load %arg14[%c0_96, %c1_97, %c0_98, %c0_99] : memref<2x3x1x32xf32, #tpu.memory_space<vmem>>, vector<1x1x1x32xf32>
    %168 = vector.shape_cast %167 : vector<1x1x1x32xf32> to vector<1x32xf32>
    %cst_100 = arith.constant dense<0.000000e+00> : vector<16xf32>
    %169 = vector.multi_reduction <add>, %164, %cst_100 [1] : vector<16x32xf32> to vector<16xf32>
    %170 = vector.shape_cast %169 : vector<16xf32> to vector<16x1xf32>
    %cst_101 = arith.constant 3.200000e+01 : f32
    %171 = vector.broadcast %cst_101 : f32 to vector<16x1xf32>
    %172 = arith.divf %170, %171 : vector<16x1xf32>
    %173 = vector.broadcast %172 : vector<16x1xf32> to vector<16x32xf32>
    %174 = arith.subf %164, %173 : vector<16x32xf32>
    %175 = arith.mulf %174, %174 : vector<16x32xf32>
    %cst_102 = arith.constant dense<0.000000e+00> : vector<16xf32>
    %176 = vector.multi_reduction <add>, %175, %cst_102 [1] : vector<16x32xf32> to vector<16xf32>
    %177 = vector.shape_cast %176 : vector<16xf32> to vector<16x1xf32>
    %cst_103 = arith.constant 3.200000e+01 : f32
    %178 = vector.broadcast %cst_103 : f32 to vector<16x1xf32>
    %179 = arith.divf %177, %178 : vector<16x1xf32>
    %180 = vector.broadcast %172 : vector<16x1xf32> to vector<16x32xf32>
    %181 = arith.subf %164, %180 : vector<16x32xf32>
    %cst_104 = arith.constant 9.99999974E-6 : f32
    %182 = vector.broadcast %cst_104 : f32 to vector<16x1xf32>
    %183 = arith.addf %179, %182 : vector<16x1xf32>
    %184 = math.rsqrt %183 : vector<16x1xf32>
    %185 = vector.broadcast %184 : vector<16x1xf32> to vector<16x32xf32>
    %186 = arith.mulf %181, %185 : vector<16x32xf32>
    %187 = vector.broadcast %166 : vector<1x32xf32> to vector<16x32xf32>
    %188 = arith.mulf %186, %187 : vector<16x32xf32>
    %189 = vector.broadcast %168 : vector<1x32xf32> to vector<16x32xf32>
    %190 = arith.addf %188, %189 : vector<16x32xf32>
    %c0_105 = arith.constant 0 : index
    %c0_106 = arith.constant 0 : index
    %c0_107 = arith.constant 0 : index
    %191 = vector.load %arg9[%c0_105, %c0_106, %c0_107] : memref<2x32x128xf32, #tpu.memory_space<vmem>>, vector<1x32x128xf32>
    %192 = vector.shape_cast %191 : vector<1x32x128xf32> to vector<32x128xf32>
    %cst_108 = arith.constant dense<0.000000e+00> : vector<16x128xf32>
    %193 = tpu.matmul %190, %192, %cst_108 {dimension_numbers = #tpu.dot_dimension_numbers<[1], [0], [0], [1], [0, 0, 1, 1], [], []>} : vector<16x32xf32>, vector<32x128xf32>, vector<16x128xf32> -> vector<16x128xf32>
    %c0_109 = arith.constant 0 : index
    %c0_110 = arith.constant 0 : index
    %c0_111 = arith.constant 0 : index
    %194 = vector.load %arg10[%c0_109, %c0_110, %c0_111] : memref<2x1x128xf32, #tpu.memory_space<vmem>>, vector<1x1x128xf32>
    %195 = vector.shape_cast %194 : vector<1x1x128xf32> to vector<1x128xf32>
    %196 = vector.broadcast %195 : vector<1x128xf32> to vector<16x128xf32>
    %197 = arith.addf %193, %196 : vector<16x128xf32>
    %cst_112 = arith.constant 0.000000e+00 : f32
    %198 = vector.broadcast %cst_112 : f32 to vector<16x128xf32>
    %199 = arith.maximumf %197, %198 : vector<16x128xf32>
    %c0_113 = arith.constant 0 : index
    %c0_114 = arith.constant 0 : index
    %c0_115 = arith.constant 0 : index
    %200 = vector.load %arg11[%c0_113, %c0_114, %c0_115] : memref<2x128x32xf32, #tpu.memory_space<vmem>>, vector<1x128x32xf32>
    %201 = vector.shape_cast %200 : vector<1x128x32xf32> to vector<128x32xf32>
    %cst_116 = arith.constant dense<0.000000e+00> : vector<16x32xf32>
    %202 = tpu.matmul %199, %201, %cst_116 {dimension_numbers = #tpu.dot_dimension_numbers<[1], [0], [0], [1], [0, 0, 1, 1], [], []>} : vector<16x128xf32>, vector<128x32xf32>, vector<16x32xf32> -> vector<16x32xf32>
    %c0_117 = arith.constant 0 : index
    %c0_118 = arith.constant 0 : index
    %c0_119 = arith.constant 0 : index
    %203 = vector.load %arg12[%c0_117, %c0_118, %c0_119] : memref<2x1x32xf32, #tpu.memory_space<vmem>>, vector<1x1x32xf32>
    %204 = vector.shape_cast %203 : vector<1x1x32xf32> to vector<1x32xf32>
    %205 = vector.broadcast %204 : vector<1x32xf32> to vector<16x32xf32>
    %206 = arith.addf %202, %205 : vector<16x32xf32>
    %207 = arith.addf %190, %206 : vector<16x32xf32>
    %c0_120 = arith.constant 0 : index
    %c2_121 = arith.constant 2 : index
    %c0_122 = arith.constant 0 : index
    %c0_123 = arith.constant 0 : index
    %208 = vector.load %arg13[%c0_120, %c2_121, %c0_122, %c0_123] : memref<2x3x1x32xf32, #tpu.memory_space<vmem>>, vector<1x1x1x32xf32>
    %209 = vector.shape_cast %208 : vector<1x1x1x32xf32> to vector<1x32xf32>
    %c0_124 = arith.constant 0 : index
    %c2_125 = arith.constant 2 : index
    %c0_126 = arith.constant 0 : index
    %c0_127 = arith.constant 0 : index
    %210 = vector.load %arg14[%c0_124, %c2_125, %c0_126, %c0_127] : memref<2x3x1x32xf32, #tpu.memory_space<vmem>>, vector<1x1x1x32xf32>
    %211 = vector.shape_cast %210 : vector<1x1x1x32xf32> to vector<1x32xf32>
    %cst_128 = arith.constant dense<0.000000e+00> : vector<16xf32>
    %212 = vector.multi_reduction <add>, %207, %cst_128 [1] : vector<16x32xf32> to vector<16xf32>
    %213 = vector.shape_cast %212 : vector<16xf32> to vector<16x1xf32>
    %cst_129 = arith.constant 3.200000e+01 : f32
    %214 = vector.broadcast %cst_129 : f32 to vector<16x1xf32>
    %215 = arith.divf %213, %214 : vector<16x1xf32>
    %216 = vector.broadcast %215 : vector<16x1xf32> to vector<16x32xf32>
    %217 = arith.subf %207, %216 : vector<16x32xf32>
    %218 = arith.mulf %217, %217 : vector<16x32xf32>
    %cst_130 = arith.constant dense<0.000000e+00> : vector<16xf32>
    %219 = vector.multi_reduction <add>, %218, %cst_130 [1] : vector<16x32xf32> to vector<16xf32>
    %220 = vector.shape_cast %219 : vector<16xf32> to vector<16x1xf32>
    %cst_131 = arith.constant 3.200000e+01 : f32
    %221 = vector.broadcast %cst_131 : f32 to vector<16x1xf32>
    %222 = arith.divf %220, %221 : vector<16x1xf32>
    %223 = vector.broadcast %215 : vector<16x1xf32> to vector<16x32xf32>
    %224 = arith.subf %207, %223 : vector<16x32xf32>
    %cst_132 = arith.constant 9.99999974E-6 : f32
    %225 = vector.broadcast %cst_132 : f32 to vector<16x1xf32>
    %226 = arith.addf %222, %225 : vector<16x1xf32>
    %227 = math.rsqrt %226 : vector<16x1xf32>
    %228 = vector.broadcast %227 : vector<16x1xf32> to vector<16x32xf32>
    %229 = arith.mulf %224, %228 : vector<16x32xf32>
    %230 = vector.broadcast %209 : vector<1x32xf32> to vector<16x32xf32>
    %231 = arith.mulf %229, %230 : vector<16x32xf32>
    %232 = vector.broadcast %211 : vector<1x32xf32> to vector<16x32xf32>
    %233 = arith.addf %231, %232 : vector<16x32xf32>
    %c1_133 = arith.constant 1 : index
    %c0_134 = arith.constant 0 : index
    %c0_135 = arith.constant 0 : index
    %c0_136 = arith.constant 0 : index
    %234 = vector.load %arg1[%c1_133, %c0_134, %c0_135, %c0_136] : memref<2x3x32x32xf32, #tpu.memory_space<vmem>>, vector<1x1x32x32xf32>
    %235 = vector.shape_cast %234 : vector<1x1x32x32xf32> to vector<32x32xf32>
    %cst_137 = arith.constant dense<0.000000e+00> : vector<16x32xf32>
    %236 = tpu.matmul %233, %235, %cst_137 {dimension_numbers = #tpu.dot_dimension_numbers<[1], [0], [0], [1], [0, 0, 1, 1], [], []>} : vector<16x32xf32>, vector<32x32xf32>, vector<16x32xf32> -> vector<16x32xf32>
    %c1_138 = arith.constant 1 : index
    %c0_139 = arith.constant 0 : index
    %c0_140 = arith.constant 0 : index
    %c0_141 = arith.constant 0 : index
    %237 = vector.load %arg2[%c1_138, %c0_139, %c0_140, %c0_141] : memref<2x3x1x32xf32, #tpu.memory_space<vmem>>, vector<1x1x1x32xf32>
    %238 = vector.shape_cast %237 : vector<1x1x1x32xf32> to vector<1x32xf32>
    %239 = vector.broadcast %238 : vector<1x32xf32> to vector<16x32xf32>
    %240 = arith.addf %236, %239 : vector<16x32xf32>
    %c1_142 = arith.constant 1 : index
    %c1_143 = arith.constant 1 : index
    %c0_144 = arith.constant 0 : index
    %c0_145 = arith.constant 0 : index
    %241 = vector.load %arg1[%c1_142, %c1_143, %c0_144, %c0_145] : memref<2x3x32x32xf32, #tpu.memory_space<vmem>>, vector<1x1x32x32xf32>
    %242 = vector.shape_cast %241 : vector<1x1x32x32xf32> to vector<32x32xf32>
    %cst_146 = arith.constant dense<0.000000e+00> : vector<16x32xf32>
    %243 = tpu.matmul %233, %242, %cst_146 {dimension_numbers = #tpu.dot_dimension_numbers<[1], [0], [0], [1], [0, 0, 1, 1], [], []>} : vector<16x32xf32>, vector<32x32xf32>, vector<16x32xf32> -> vector<16x32xf32>
    %c1_147 = arith.constant 1 : index
    %c1_148 = arith.constant 1 : index
    %c0_149 = arith.constant 0 : index
    %c0_150 = arith.constant 0 : index
    %244 = vector.load %arg2[%c1_147, %c1_148, %c0_149, %c0_150] : memref<2x3x1x32xf32, #tpu.memory_space<vmem>>, vector<1x1x1x32xf32>
    %245 = vector.shape_cast %244 : vector<1x1x1x32xf32> to vector<1x32xf32>
    %246 = vector.broadcast %245 : vector<1x32xf32> to vector<16x32xf32>
    %247 = arith.addf %243, %246 : vector<16x32xf32>
    %c1_151 = arith.constant 1 : index
    %c2_152 = arith.constant 2 : index
    %c0_153 = arith.constant 0 : index
    %c0_154 = arith.constant 0 : index
    %248 = vector.load %arg1[%c1_151, %c2_152, %c0_153, %c0_154] : memref<2x3x32x32xf32, #tpu.memory_space<vmem>>, vector<1x1x32x32xf32>
    %249 = vector.shape_cast %248 : vector<1x1x32x32xf32> to vector<32x32xf32>
    %cst_155 = arith.constant dense<0.000000e+00> : vector<16x32xf32>
    %250 = tpu.matmul %233, %249, %cst_155 {dimension_numbers = #tpu.dot_dimension_numbers<[1], [0], [0], [1], [0, 0, 1, 1], [], []>} : vector<16x32xf32>, vector<32x32xf32>, vector<16x32xf32> -> vector<16x32xf32>
    %c1_156 = arith.constant 1 : index
    %c2_157 = arith.constant 2 : index
    %c0_158 = arith.constant 0 : index
    %c0_159 = arith.constant 0 : index
    %251 = vector.load %arg2[%c1_156, %c2_157, %c0_158, %c0_159] : memref<2x3x1x32xf32, #tpu.memory_space<vmem>>, vector<1x1x1x32xf32>
    %252 = vector.shape_cast %251 : vector<1x1x1x32xf32> to vector<1x32xf32>
    %253 = vector.broadcast %252 : vector<1x32xf32> to vector<16x32xf32>
    %254 = arith.addf %250, %253 : vector<16x32xf32>
    %255 = vector.shape_cast %240 : vector<16x32xf32> to vector<2x8x32xf32>
    %256 = vector.shape_cast %247 : vector<16x32xf32> to vector<2x8x32xf32>
    %257 = vector.shape_cast %254 : vector<16x32xf32> to vector<2x8x32xf32>
    %258 = vector.shape_cast %255 : vector<2x8x32xf32> to vector<2x1x8x32xf32>
    %259 = vector.shape_cast %256 : vector<2x8x32xf32> to vector<1x2x8x32xf32>
    %260 = vector.broadcast %258 : vector<2x1x8x32xf32> to vector<2x2x8x32xf32>
    %261 = vector.broadcast %259 : vector<1x2x8x32xf32> to vector<2x2x8x32xf32>
    %262 = arith.mulf %260, %261 : vector<2x2x8x32xf32>
    %263 = vector.shape_cast %262 : vector<2x2x8x32xf32> to vector<32x32xf32>
    %cst_160 = arith.constant dense<0.000000e+00> : vector<32x4xf32>
    %264 = tpu.matmul %263, %10, %cst_160 {dimension_numbers = #tpu.dot_dimension_numbers<[1], [0], [0], [1], [0, 0, 1, 1], [], []>} : vector<32x32xf32>, vector<32x4xf32>, vector<32x4xf32> -> vector<32x4xf32>
    %265 = vector.shape_cast %264 : vector<32x4xf32> to vector<2x2x8x4xf32>
    %cst_161 = arith.constant dense<0xFF800000> : vector<2x8x4xf32>
    %266 = vector.multi_reduction <maximumf>, %265, %cst_161 [1] : vector<2x2x8x4xf32> to vector<2x8x4xf32>
    %267 = vector.shape_cast %266 : vector<2x8x4xf32> to vector<2x1x8x4xf32>
    %268 = vector.broadcast %267 : vector<2x1x8x4xf32> to vector<2x2x8x4xf32>
    %269 = arith.subf %265, %268 : vector<2x2x8x4xf32>
    %270 = math.exp %269 : vector<2x2x8x4xf32>
    %cst_162 = arith.constant dense<0.000000e+00> : vector<2x8x4xf32>
    %271 = vector.multi_reduction <add>, %270, %cst_162 [1] : vector<2x2x8x4xf32> to vector<2x8x4xf32>
    %272 = vector.shape_cast %271 : vector<2x8x4xf32> to vector<2x1x8x4xf32>
    %273 = tpu.reciprocal %272 {approx = true} : vector<2x1x8x4xf32> -> vector<2x1x8x4xf32>
    %274 = vector.broadcast %273 : vector<2x1x8x4xf32> to vector<2x2x8x4xf32>
    %275 = arith.mulf %270, %274 : vector<2x2x8x4xf32>
    %276 = vector.shape_cast %275 : vector<2x2x8x4xf32> to vector<32x4xf32>
    %cst_163 = arith.constant dense<0.000000e+00> : vector<32x32xf32>
    %277 = tpu.matmul %276, %21, %cst_163 {dimension_numbers = #tpu.dot_dimension_numbers<[1], [0], [0], [1], [0, 0, 1, 1], [], []>} : vector<32x4xf32>, vector<4x32xf32>, vector<32x32xf32> -> vector<32x32xf32>
    %278 = vector.shape_cast %277 : vector<32x32xf32> to vector<2x2x8x32xf32>
    %279 = vector.shape_cast %257 : vector<2x8x32xf32> to vector<1x2x8x32xf32>
    %280 = vector.broadcast %279 : vector<1x2x8x32xf32> to vector<2x2x8x32xf32>
    %281 = arith.mulf %278, %280 : vector<2x2x8x32xf32>
    %cst_164 = arith.constant dense<0.000000e+00> : vector<2x8x32xf32>
    %282 = vector.multi_reduction <add>, %281, %cst_164 [1] : vector<2x2x8x32xf32> to vector<2x8x32xf32>
    %283 = vector.shape_cast %282 : vector<2x8x32xf32> to vector<16x32xf32>
    %c1_165 = arith.constant 1 : index
    %c0_166 = arith.constant 0 : index
    %c0_167 = arith.constant 0 : index
    %284 = vector.load %arg3[%c1_165, %c0_166, %c0_167] : memref<2x32x32xf32, #tpu.memory_space<vmem>>, vector<1x32x32xf32>
    %285 = vector.shape_cast %284 : vector<1x32x32xf32> to vector<32x32xf32>
    %cst_168 = arith.constant dense<0.000000e+00> : vector<16x32xf32>
    %286 = tpu.matmul %283, %285, %cst_168 {dimension_numbers = #tpu.dot_dimension_numbers<[1], [0], [0], [1], [0, 0, 1, 1], [], []>} : vector<16x32xf32>, vector<32x32xf32>, vector<16x32xf32> -> vector<16x32xf32>
    %c1_169 = arith.constant 1 : index
    %c0_170 = arith.constant 0 : index
    %c0_171 = arith.constant 0 : index
    %287 = vector.load %arg4[%c1_169, %c0_170, %c0_171] : memref<2x1x32xf32, #tpu.memory_space<vmem>>, vector<1x1x32xf32>
    %288 = vector.shape_cast %287 : vector<1x1x32xf32> to vector<1x32xf32>
    %289 = vector.broadcast %288 : vector<1x32xf32> to vector<16x32xf32>
    %290 = arith.addf %286, %289 : vector<16x32xf32>
    %291 = arith.addf %233, %290 : vector<16x32xf32>
    %c1_172 = arith.constant 1 : index
    %c0_173 = arith.constant 0 : index
    %c0_174 = arith.constant 0 : index
    %c0_175 = arith.constant 0 : index
    %292 = vector.load %arg13[%c1_172, %c0_173, %c0_174, %c0_175] : memref<2x3x1x32xf32, #tpu.memory_space<vmem>>, vector<1x1x1x32xf32>
    %293 = vector.shape_cast %292 : vector<1x1x1x32xf32> to vector<1x32xf32>
    %c1_176 = arith.constant 1 : index
    %c0_177 = arith.constant 0 : index
    %c0_178 = arith.constant 0 : index
    %c0_179 = arith.constant 0 : index
    %294 = vector.load %arg14[%c1_176, %c0_177, %c0_178, %c0_179] : memref<2x3x1x32xf32, #tpu.memory_space<vmem>>, vector<1x1x1x32xf32>
    %295 = vector.shape_cast %294 : vector<1x1x1x32xf32> to vector<1x32xf32>
    %cst_180 = arith.constant dense<0.000000e+00> : vector<16xf32>
    %296 = vector.multi_reduction <add>, %291, %cst_180 [1] : vector<16x32xf32> to vector<16xf32>
    %297 = vector.shape_cast %296 : vector<16xf32> to vector<16x1xf32>
    %cst_181 = arith.constant 3.200000e+01 : f32
    %298 = vector.broadcast %cst_181 : f32 to vector<16x1xf32>
    %299 = arith.divf %297, %298 : vector<16x1xf32>
    %300 = vector.broadcast %299 : vector<16x1xf32> to vector<16x32xf32>
    %301 = arith.subf %291, %300 : vector<16x32xf32>
    %302 = arith.mulf %301, %301 : vector<16x32xf32>
    %cst_182 = arith.constant dense<0.000000e+00> : vector<16xf32>
    %303 = vector.multi_reduction <add>, %302, %cst_182 [1] : vector<16x32xf32> to vector<16xf32>
    %304 = vector.shape_cast %303 : vector<16xf32> to vector<16x1xf32>
    %cst_183 = arith.constant 3.200000e+01 : f32
    %305 = vector.broadcast %cst_183 : f32 to vector<16x1xf32>
    %306 = arith.divf %304, %305 : vector<16x1xf32>
    %307 = vector.broadcast %299 : vector<16x1xf32> to vector<16x32xf32>
    %308 = arith.subf %291, %307 : vector<16x32xf32>
    %cst_184 = arith.constant 9.99999974E-6 : f32
    %309 = vector.broadcast %cst_184 : f32 to vector<16x1xf32>
    %310 = arith.addf %306, %309 : vector<16x1xf32>
    %311 = math.rsqrt %310 : vector<16x1xf32>
    %312 = vector.broadcast %311 : vector<16x1xf32> to vector<16x32xf32>
    %313 = arith.mulf %308, %312 : vector<16x32xf32>
    %314 = vector.broadcast %293 : vector<1x32xf32> to vector<16x32xf32>
    %315 = arith.mulf %313, %314 : vector<16x32xf32>
    %316 = vector.broadcast %295 : vector<1x32xf32> to vector<16x32xf32>
    %317 = arith.addf %315, %316 : vector<16x32xf32>
    %c1_185 = arith.constant 1 : index
    %c0_186 = arith.constant 0 : index
    %c0_187 = arith.constant 0 : index
    %c0_188 = arith.constant 0 : index
    %318 = vector.load %arg5[%c1_185, %c0_186, %c0_187, %c0_188] : memref<2x3x32x32xf32, #tpu.memory_space<vmem>>, vector<1x1x32x32xf32>
    %319 = vector.shape_cast %318 : vector<1x1x32x32xf32> to vector<32x32xf32>
    %cst_189 = arith.constant dense<0.000000e+00> : vector<16x32xf32>
    %320 = tpu.matmul %317, %319, %cst_189 {dimension_numbers = #tpu.dot_dimension_numbers<[1], [0], [0], [1], [0, 0, 1, 1], [], []>} : vector<16x32xf32>, vector<32x32xf32>, vector<16x32xf32> -> vector<16x32xf32>
    %c1_190 = arith.constant 1 : index
    %c0_191 = arith.constant 0 : index
    %c0_192 = arith.constant 0 : index
    %c0_193 = arith.constant 0 : index
    %321 = vector.load %arg6[%c1_190, %c0_191, %c0_192, %c0_193] : memref<2x3x1x32xf32, #tpu.memory_space<vmem>>, vector<1x1x1x32xf32>
    %322 = vector.shape_cast %321 : vector<1x1x1x32xf32> to vector<1x32xf32>
    %323 = vector.broadcast %322 : vector<1x32xf32> to vector<16x32xf32>
    %324 = arith.addf %320, %323 : vector<16x32xf32>
    %c1_194 = arith.constant 1 : index
    %c1_195 = arith.constant 1 : index
    %c0_196 = arith.constant 0 : index
    %c0_197 = arith.constant 0 : index
    %325 = vector.load %arg5[%c1_194, %c1_195, %c0_196, %c0_197] : memref<2x3x32x32xf32, #tpu.memory_space<vmem>>, vector<1x1x32x32xf32>
    %326 = vector.shape_cast %325 : vector<1x1x32x32xf32> to vector<32x32xf32>
    %cst_198 = arith.constant dense<0.000000e+00> : vector<16x32xf32>
    %327 = tpu.matmul %22, %326, %cst_198 {dimension_numbers = #tpu.dot_dimension_numbers<[1], [0], [0], [1], [0, 0, 1, 1], [], []>} : vector<16x32xf32>, vector<32x32xf32>, vector<16x32xf32> -> vector<16x32xf32>
    %c1_199 = arith.constant 1 : index
    %c1_200 = arith.constant 1 : index
    %c0_201 = arith.constant 0 : index
    %c0_202 = arith.constant 0 : index
    %328 = vector.load %arg6[%c1_199, %c1_200, %c0_201, %c0_202] : memref<2x3x1x32xf32, #tpu.memory_space<vmem>>, vector<1x1x1x32xf32>
    %329 = vector.shape_cast %328 : vector<1x1x1x32xf32> to vector<1x32xf32>
    %330 = vector.broadcast %329 : vector<1x32xf32> to vector<16x32xf32>
    %331 = arith.addf %327, %330 : vector<16x32xf32>
    %c1_203 = arith.constant 1 : index
    %c2_204 = arith.constant 2 : index
    %c0_205 = arith.constant 0 : index
    %c0_206 = arith.constant 0 : index
    %332 = vector.load %arg5[%c1_203, %c2_204, %c0_205, %c0_206] : memref<2x3x32x32xf32, #tpu.memory_space<vmem>>, vector<1x1x32x32xf32>
    %333 = vector.shape_cast %332 : vector<1x1x32x32xf32> to vector<32x32xf32>
    %cst_207 = arith.constant dense<0.000000e+00> : vector<16x32xf32>
    %334 = tpu.matmul %22, %333, %cst_207 {dimension_numbers = #tpu.dot_dimension_numbers<[1], [0], [0], [1], [0, 0, 1, 1], [], []>} : vector<16x32xf32>, vector<32x32xf32>, vector<16x32xf32> -> vector<16x32xf32>
    %c1_208 = arith.constant 1 : index
    %c2_209 = arith.constant 2 : index
    %c0_210 = arith.constant 0 : index
    %c0_211 = arith.constant 0 : index
    %335 = vector.load %arg6[%c1_208, %c2_209, %c0_210, %c0_211] : memref<2x3x1x32xf32, #tpu.memory_space<vmem>>, vector<1x1x1x32xf32>
    %336 = vector.shape_cast %335 : vector<1x1x1x32xf32> to vector<1x32xf32>
    %337 = vector.broadcast %336 : vector<1x32xf32> to vector<16x32xf32>
    %338 = arith.addf %334, %337 : vector<16x32xf32>
    %339 = vector.shape_cast %324 : vector<16x32xf32> to vector<2x8x32xf32>
    %340 = vector.shape_cast %331 : vector<16x32xf32> to vector<2x8x32xf32>
    %341 = vector.shape_cast %338 : vector<16x32xf32> to vector<2x8x32xf32>
    %342 = vector.shape_cast %339 : vector<2x8x32xf32> to vector<2x1x8x32xf32>
    %343 = vector.shape_cast %340 : vector<2x8x32xf32> to vector<1x2x8x32xf32>
    %344 = vector.broadcast %342 : vector<2x1x8x32xf32> to vector<2x2x8x32xf32>
    %345 = vector.broadcast %343 : vector<1x2x8x32xf32> to vector<2x2x8x32xf32>
    %346 = arith.mulf %344, %345 : vector<2x2x8x32xf32>
    %347 = vector.shape_cast %346 : vector<2x2x8x32xf32> to vector<32x32xf32>
    %cst_212 = arith.constant dense<0.000000e+00> : vector<32x4xf32>
    %348 = tpu.matmul %347, %10, %cst_212 {dimension_numbers = #tpu.dot_dimension_numbers<[1], [0], [0], [1], [0, 0, 1, 1], [], []>} : vector<32x32xf32>, vector<32x4xf32>, vector<32x4xf32> -> vector<32x4xf32>
    %349 = vector.shape_cast %348 : vector<32x4xf32> to vector<2x2x8x4xf32>
    %cst_213 = arith.constant dense<0xFF800000> : vector<2x8x4xf32>
    %350 = vector.multi_reduction <maximumf>, %349, %cst_213 [1] : vector<2x2x8x4xf32> to vector<2x8x4xf32>
    %351 = vector.shape_cast %350 : vector<2x8x4xf32> to vector<2x1x8x4xf32>
    %352 = vector.broadcast %351 : vector<2x1x8x4xf32> to vector<2x2x8x4xf32>
    %353 = arith.subf %349, %352 : vector<2x2x8x4xf32>
    %354 = math.exp %353 : vector<2x2x8x4xf32>
    %cst_214 = arith.constant dense<0.000000e+00> : vector<2x8x4xf32>
    %355 = vector.multi_reduction <add>, %354, %cst_214 [1] : vector<2x2x8x4xf32> to vector<2x8x4xf32>
    %356 = vector.shape_cast %355 : vector<2x8x4xf32> to vector<2x1x8x4xf32>
    %357 = tpu.reciprocal %356 {approx = true} : vector<2x1x8x4xf32> -> vector<2x1x8x4xf32>
    %358 = vector.broadcast %357 : vector<2x1x8x4xf32> to vector<2x2x8x4xf32>
    %359 = arith.mulf %354, %358 : vector<2x2x8x4xf32>
    %360 = vector.shape_cast %359 : vector<2x2x8x4xf32> to vector<32x4xf32>
    %cst_215 = arith.constant dense<0.000000e+00> : vector<32x32xf32>
    %361 = tpu.matmul %360, %21, %cst_215 {dimension_numbers = #tpu.dot_dimension_numbers<[1], [0], [0], [1], [0, 0, 1, 1], [], []>} : vector<32x4xf32>, vector<4x32xf32>, vector<32x32xf32> -> vector<32x32xf32>
    %362 = vector.shape_cast %361 : vector<32x32xf32> to vector<2x2x8x32xf32>
    %363 = vector.shape_cast %341 : vector<2x8x32xf32> to vector<1x2x8x32xf32>
    %364 = vector.broadcast %363 : vector<1x2x8x32xf32> to vector<2x2x8x32xf32>
    %365 = arith.mulf %362, %364 : vector<2x2x8x32xf32>
    %cst_216 = arith.constant dense<0.000000e+00> : vector<2x8x32xf32>
    %366 = vector.multi_reduction <add>, %365, %cst_216 [1] : vector<2x2x8x32xf32> to vector<2x8x32xf32>
    %367 = vector.shape_cast %366 : vector<2x8x32xf32> to vector<16x32xf32>
    %c1_217 = arith.constant 1 : index
    %c0_218 = arith.constant 0 : index
    %c0_219 = arith.constant 0 : index
    %368 = vector.load %arg7[%c1_217, %c0_218, %c0_219] : memref<2x32x32xf32, #tpu.memory_space<vmem>>, vector<1x32x32xf32>
    %369 = vector.shape_cast %368 : vector<1x32x32xf32> to vector<32x32xf32>
    %cst_220 = arith.constant dense<0.000000e+00> : vector<16x32xf32>
    %370 = tpu.matmul %367, %369, %cst_220 {dimension_numbers = #tpu.dot_dimension_numbers<[1], [0], [0], [1], [0, 0, 1, 1], [], []>} : vector<16x32xf32>, vector<32x32xf32>, vector<16x32xf32> -> vector<16x32xf32>
    %c1_221 = arith.constant 1 : index
    %c0_222 = arith.constant 0 : index
    %c0_223 = arith.constant 0 : index
    %371 = vector.load %arg8[%c1_221, %c0_222, %c0_223] : memref<2x1x32xf32, #tpu.memory_space<vmem>>, vector<1x1x32xf32>
    %372 = vector.shape_cast %371 : vector<1x1x32xf32> to vector<1x32xf32>
    %373 = vector.broadcast %372 : vector<1x32xf32> to vector<16x32xf32>
    %374 = arith.addf %370, %373 : vector<16x32xf32>
    %375 = arith.addf %317, %374 : vector<16x32xf32>
    %c1_224 = arith.constant 1 : index
    %c1_225 = arith.constant 1 : index
    %c0_226 = arith.constant 0 : index
    %c0_227 = arith.constant 0 : index
    %376 = vector.load %arg13[%c1_224, %c1_225, %c0_226, %c0_227] : memref<2x3x1x32xf32, #tpu.memory_space<vmem>>, vector<1x1x1x32xf32>
    %377 = vector.shape_cast %376 : vector<1x1x1x32xf32> to vector<1x32xf32>
    %c1_228 = arith.constant 1 : index
    %c1_229 = arith.constant 1 : index
    %c0_230 = arith.constant 0 : index
    %c0_231 = arith.constant 0 : index
    %378 = vector.load %arg14[%c1_228, %c1_229, %c0_230, %c0_231] : memref<2x3x1x32xf32, #tpu.memory_space<vmem>>, vector<1x1x1x32xf32>
    %379 = vector.shape_cast %378 : vector<1x1x1x32xf32> to vector<1x32xf32>
    %cst_232 = arith.constant dense<0.000000e+00> : vector<16xf32>
    %380 = vector.multi_reduction <add>, %375, %cst_232 [1] : vector<16x32xf32> to vector<16xf32>
    %381 = vector.shape_cast %380 : vector<16xf32> to vector<16x1xf32>
    %cst_233 = arith.constant 3.200000e+01 : f32
    %382 = vector.broadcast %cst_233 : f32 to vector<16x1xf32>
    %383 = arith.divf %381, %382 : vector<16x1xf32>
    %384 = vector.broadcast %383 : vector<16x1xf32> to vector<16x32xf32>
    %385 = arith.subf %375, %384 : vector<16x32xf32>
    %386 = arith.mulf %385, %385 : vector<16x32xf32>
    %cst_234 = arith.constant dense<0.000000e+00> : vector<16xf32>
    %387 = vector.multi_reduction <add>, %386, %cst_234 [1] : vector<16x32xf32> to vector<16xf32>
    %388 = vector.shape_cast %387 : vector<16xf32> to vector<16x1xf32>
    %cst_235 = arith.constant 3.200000e+01 : f32
    %389 = vector.broadcast %cst_235 : f32 to vector<16x1xf32>
    %390 = arith.divf %388, %389 : vector<16x1xf32>
    %391 = vector.broadcast %383 : vector<16x1xf32> to vector<16x32xf32>
    %392 = arith.subf %375, %391 : vector<16x32xf32>
    %cst_236 = arith.constant 9.99999974E-6 : f32
    %393 = vector.broadcast %cst_236 : f32 to vector<16x1xf32>
    %394 = arith.addf %390, %393 : vector<16x1xf32>
    %395 = math.rsqrt %394 : vector<16x1xf32>
    %396 = vector.broadcast %395 : vector<16x1xf32> to vector<16x32xf32>
    %397 = arith.mulf %392, %396 : vector<16x32xf32>
    %398 = vector.broadcast %377 : vector<1x32xf32> to vector<16x32xf32>
    %399 = arith.mulf %397, %398 : vector<16x32xf32>
    %400 = vector.broadcast %379 : vector<1x32xf32> to vector<16x32xf32>
    %401 = arith.addf %399, %400 : vector<16x32xf32>
    %c1_237 = arith.constant 1 : index
    %c0_238 = arith.constant 0 : index
    %c0_239 = arith.constant 0 : index
    %402 = vector.load %arg9[%c1_237, %c0_238, %c0_239] : memref<2x32x128xf32, #tpu.memory_space<vmem>>, vector<1x32x128xf32>
    %403 = vector.shape_cast %402 : vector<1x32x128xf32> to vector<32x128xf32>
    %cst_240 = arith.constant dense<0.000000e+00> : vector<16x128xf32>
    %404 = tpu.matmul %401, %403, %cst_240 {dimension_numbers = #tpu.dot_dimension_numbers<[1], [0], [0], [1], [0, 0, 1, 1], [], []>} : vector<16x32xf32>, vector<32x128xf32>, vector<16x128xf32> -> vector<16x128xf32>
    %c1_241 = arith.constant 1 : index
    %c0_242 = arith.constant 0 : index
    %c0_243 = arith.constant 0 : index
    %405 = vector.load %arg10[%c1_241, %c0_242, %c0_243] : memref<2x1x128xf32, #tpu.memory_space<vmem>>, vector<1x1x128xf32>
    %406 = vector.shape_cast %405 : vector<1x1x128xf32> to vector<1x128xf32>
    %407 = vector.broadcast %406 : vector<1x128xf32> to vector<16x128xf32>
    %408 = arith.addf %404, %407 : vector<16x128xf32>
    %cst_244 = arith.constant 0.000000e+00 : f32
    %409 = vector.broadcast %cst_244 : f32 to vector<16x128xf32>
    %410 = arith.maximumf %408, %409 : vector<16x128xf32>
    %c1_245 = arith.constant 1 : index
    %c0_246 = arith.constant 0 : index
    %c0_247 = arith.constant 0 : index
    %411 = vector.load %arg11[%c1_245, %c0_246, %c0_247] : memref<2x128x32xf32, #tpu.memory_space<vmem>>, vector<1x128x32xf32>
    %412 = vector.shape_cast %411 : vector<1x128x32xf32> to vector<128x32xf32>
    %cst_248 = arith.constant dense<0.000000e+00> : vector<16x32xf32>
    %413 = tpu.matmul %410, %412, %cst_248 {dimension_numbers = #tpu.dot_dimension_numbers<[1], [0], [0], [1], [0, 0, 1, 1], [], []>} : vector<16x128xf32>, vector<128x32xf32>, vector<16x32xf32> -> vector<16x32xf32>
    %c1_249 = arith.constant 1 : index
    %c0_250 = arith.constant 0 : index
    %c0_251 = arith.constant 0 : index
    %414 = vector.load %arg12[%c1_249, %c0_250, %c0_251] : memref<2x1x32xf32, #tpu.memory_space<vmem>>, vector<1x1x32xf32>
    %415 = vector.shape_cast %414 : vector<1x1x32xf32> to vector<1x32xf32>
    %416 = vector.broadcast %415 : vector<1x32xf32> to vector<16x32xf32>
    %417 = arith.addf %413, %416 : vector<16x32xf32>
    %418 = arith.addf %401, %417 : vector<16x32xf32>
    %c1_252 = arith.constant 1 : index
    %c2_253 = arith.constant 2 : index
    %c0_254 = arith.constant 0 : index
    %c0_255 = arith.constant 0 : index
    %419 = vector.load %arg13[%c1_252, %c2_253, %c0_254, %c0_255] : memref<2x3x1x32xf32, #tpu.memory_space<vmem>>, vector<1x1x1x32xf32>
    %420 = vector.shape_cast %419 : vector<1x1x1x32xf32> to vector<1x32xf32>
    %c1_256 = arith.constant 1 : index
    %c2_257 = arith.constant 2 : index
    %c0_258 = arith.constant 0 : index
    %c0_259 = arith.constant 0 : index
    %421 = vector.load %arg14[%c1_256, %c2_257, %c0_258, %c0_259] : memref<2x3x1x32xf32, #tpu.memory_space<vmem>>, vector<1x1x1x32xf32>
    %422 = vector.shape_cast %421 : vector<1x1x1x32xf32> to vector<1x32xf32>
    %cst_260 = arith.constant dense<0.000000e+00> : vector<16xf32>
    %423 = vector.multi_reduction <add>, %418, %cst_260 [1] : vector<16x32xf32> to vector<16xf32>
    %424 = vector.shape_cast %423 : vector<16xf32> to vector<16x1xf32>
    %cst_261 = arith.constant 3.200000e+01 : f32
    %425 = vector.broadcast %cst_261 : f32 to vector<16x1xf32>
    %426 = arith.divf %424, %425 : vector<16x1xf32>
    %427 = vector.broadcast %426 : vector<16x1xf32> to vector<16x32xf32>
    %428 = arith.subf %418, %427 : vector<16x32xf32>
    %429 = arith.mulf %428, %428 : vector<16x32xf32>
    %cst_262 = arith.constant dense<0.000000e+00> : vector<16xf32>
    %430 = vector.multi_reduction <add>, %429, %cst_262 [1] : vector<16x32xf32> to vector<16xf32>
    %431 = vector.shape_cast %430 : vector<16xf32> to vector<16x1xf32>
    %cst_263 = arith.constant 3.200000e+01 : f32
    %432 = vector.broadcast %cst_263 : f32 to vector<16x1xf32>
    %433 = arith.divf %431, %432 : vector<16x1xf32>
    %434 = vector.broadcast %426 : vector<16x1xf32> to vector<16x32xf32>
    %435 = arith.subf %418, %434 : vector<16x32xf32>
    %cst_264 = arith.constant 9.99999974E-6 : f32
    %436 = vector.broadcast %cst_264 : f32 to vector<16x1xf32>
    %437 = arith.addf %433, %436 : vector<16x1xf32>
    %438 = math.rsqrt %437 : vector<16x1xf32>
    %439 = vector.broadcast %438 : vector<16x1xf32> to vector<16x32xf32>
    %440 = arith.mulf %435, %439 : vector<16x32xf32>
    %441 = vector.broadcast %420 : vector<1x32xf32> to vector<16x32xf32>
    %442 = arith.mulf %440, %441 : vector<16x32xf32>
    %443 = vector.broadcast %422 : vector<1x32xf32> to vector<16x32xf32>
    %444 = arith.addf %442, %443 : vector<16x32xf32>
    %c0_265 = arith.constant 0 : index
    %c0_266 = arith.constant 0 : index
    %445 = vector.load %arg15[%c0_265, %c0_266] : memref<32x16xf32, #tpu.memory_space<vmem>>, vector<32x16xf32>
    %cst_267 = arith.constant dense<0.000000e+00> : vector<16x16xf32>
    %446 = tpu.matmul %444, %445, %cst_267 {dimension_numbers = #tpu.dot_dimension_numbers<[1], [0], [0], [1], [0, 0, 1, 1], [], []>} : vector<16x32xf32>, vector<32x16xf32>, vector<16x16xf32> -> vector<16x16xf32>
    %c0_268 = arith.constant 0 : index
    %c0_269 = arith.constant 0 : index
    %447 = vector.load %arg16[%c0_268, %c0_269] : memref<1x16xf32, #tpu.memory_space<vmem>>, vector<1x16xf32>
    %448 = vector.broadcast %447 : vector<1x16xf32> to vector<16x16xf32>
    %449 = arith.addf %446, %448 : vector<16x16xf32>
    %450 = vector.shape_cast %449 : vector<16x16xf32> to vector<2x8x16xf32>
    %c0_270 = arith.constant 0 : index
    %c0_271 = arith.constant 0 : index
    %c0_272 = arith.constant 0 : index
    %451 = vector.load %arg17[%c0_270, %c0_271, %c0_272] : memref<2x8x16xf32, #tpu.memory_space<vmem>>, vector<2x8x16xf32>
    tpu.vector_store %arg17[%c0_270, %c0_271, %c0_272], %450 {strides = array<i32>} : memref<2x8x16xf32, #tpu.memory_space<vmem>>, vector<2x8x16xf32>,
    return
  }
}

</mosaic_0001>

<llo_original>
// kernel: decoder_forward.1
$region0: #{decoder_forward.1}
  #allocation0 [shape = 'u32[]', space=smem, size = 0x4, offset = 0x4, fixed_abs, tag = 'smem constant byte address 0x4 - core index']
  #allocation1 [shape = 'u32[72,128]{1,0:T(1,128)}', space=vmem, size = 0x9000, scoped, tag = 'internal scratch']
  %s0 = inlined_call_operand.vmem [shape: f32[16,32], index: 0, kind: input, shape index: {}]
  %s1 = inlined_call_operand.vmem [shape: f32[2,3,32,32], index: 1, kind: input, shape index: {}]
  %s2 = inlined_call_operand.vmem [shape: f32[2,3,1,32], index: 2, kind: input, shape index: {}]
  %s3 = inlined_call_operand.vmem [shape: f32[2,32,32], index: 3, kind: input, shape index: {}]
  %s4 = inlined_call_operand.vmem [shape: f32[2,1,32], index: 4, kind: input, shape index: {}]
  %s5 = inlined_call_operand.vmem [shape: f32[2,3,32,32], index: 5, kind: input, shape index: {}]
  %s6 = inlined_call_operand.vmem [shape: f32[2,3,1,32], index: 6, kind: input, shape index: {}]
  %s7 = inlined_call_operand.vmem [shape: f32[2,32,32], index: 7, kind: input, shape index: {}]
  %s8 = inlined_call_operand.vmem [shape: f32[2,1,32], index: 8, kind: input, shape index: {}]
  %s9 = inlined_call_operand.vmem [shape: f32[2,32,128], index: 9, kind: input, shape index: {}]
  %s10 = inlined_call_operand.vmem [shape: f32[2,1,128], index: 10, kind: input, shape index: {}]
  %s11 = inlined_call_operand.vmem [shape: f32[2,128,32], index: 11, kind: input, shape index: {}]
  %s12 = inlined_call_operand.vmem [shape: f32[2,1,32], index: 12, kind: input, shape index: {}]
  %s13 = inlined_call_operand.vmem [shape: f32[2,3,1,32], index: 13, kind: input, shape index: {}]
  %s14 = inlined_call_operand.vmem [shape: f32[2,3,1,32], index: 14, kind: input, shape index: {}]
  %s15 = inlined_call_operand.vmem [shape: f32[32,16], index: 15, kind: input, shape index: {}]
  %s16 = inlined_call_operand.vmem [shape: f32[1,16], index: 16, kind: input, shape index: {}]
  %s17 = inlined_call_operand.hbm [shape: f32[2,8,16], index: 17, kind: output, shape index: {}]
  %s18 = sld [smem:[#allocation0]]
  $region78: #{decoder_forward.1} parent=0
    _
  %s20 = ssub.s32 1, %s18
  %s21 = scalar_select 0, %s20, %s18
  $region1: #{decoder_forward.1} parent=0
    #allocation2 [shape = 'u8[8192]{0}', space=vmem, size = 0x2000, scoped, tag = 'output window, operand 0, single buffered']
    #allocation3 [shape = 's32[1]{0}', space=sflag, size = 0x4, scoped, tag = 'scoped memory for decoder_forward.1']
    %22 = vsyncpa [#allocation3], 0
    // Predicated region
    $region2: #{decoder_forward.1} parent=1 // pred_check
      _
    $region3: #{decoder_forward.1} parent=1 // pred_check_branch
      %24 = sbr.rel (0) target = $region5
    $region4: #{decoder_forward.1} parent=1 // pred_region
      _
    $region5: #{decoder_forward.1} parent=1 // pred_fallthru
      _
    // Predicated region
    $region6: #{decoder_forward.1} parent=1 // pred_check
      _
    $region7: #{decoder_forward.1} parent=1 // pred_check_branch
      %26 = sbr.rel (0) target = $region9
    $region8: #{decoder_forward.1} parent=1 // pred_region
      _
    $region9: #{decoder_forward.1} parent=1 // pred_fallthru
      _
    // Predicated region
    $region10: #{decoder_forward.1} parent=1 // pred_check
      _
    $region11: #{decoder_forward.1} parent=1 // pred_check_branch
      %28 = sbr.rel (0) target = $region13
    $region12: #{decoder_forward.1} parent=1 // pred_region
      _
    $region13: #{decoder_forward.1} parent=1 // pred_fallthru
      _
    // Predicated region
    $region14: #{decoder_forward.1} parent=1 // pred_check
      _
    $region15: #{decoder_forward.1} parent=1 // pred_check_branch
      %30 = sbr.rel (0) target = $region17
    $region16: #{decoder_forward.1} parent=1 // pred_region
      _
    $region17: #{decoder_forward.1} parent=1 // pred_fallthru
      _
    // Predicated region
    $region18: #{decoder_forward.1} parent=1 // pred_check
      _
    $region19: #{decoder_forward.1} parent=1 // pred_check_branch
      %32 = sbr.rel (0) target = $region21
    $region20: #{decoder_forward.1} parent=1 // pred_region
      _
    $region21: #{decoder_forward.1} parent=1 // pred_fallthru
      _
    // Predicated region
    $region22: #{decoder_forward.1} parent=1 // pred_check
      _
    $region23: #{decoder_forward.1} parent=1 // pred_check_branch
      %34 = sbr.rel (0) target = $region25
    $region24: #{decoder_forward.1} parent=1 // pred_region
      _
    $region25: #{decoder_forward.1} parent=1 // pred_fallthru
      _
    // Predicated region
    $region26: #{decoder_forward.1} parent=1 // pred_check
      _
    $region27: #{decoder_forward.1} parent=1 // pred_check_branch
      %36 = sbr.rel (0) target = $region29
    $region28: #{decoder_forward.1} parent=1 // pred_region
      _
    $region29: #{decoder_forward.1} parent=1 // pred_fallthru
      _
    // Predicated region
    $region30: #{decoder_forward.1} parent=1 // pred_check
      _
    $region31: #{decoder_forward.1} parent=1 // pred_check_branch
      %38 = sbr.rel (0) target = $region33
    $region32: #{decoder_forward.1} parent=1 // pred_region
      _
    $region33: #{decoder_forward.1} parent=1 // pred_fallthru
      _
    // Predicated region
    $region34: #{decoder_forward.1} parent=1 // pred_check
      _
    $region35: #{decoder_forward.1} parent=1 // pred_check_branch
      %40 = sbr.rel (0) target = $region37
    $region36: #{decoder_forward.1} parent=1 // pred_region
      _
    $region37: #{decoder_forward.1} parent=1 // pred_fallthru
      _
    // Predicated region
    $region38: #{decoder_forward.1} parent=1 // pred_check
      _
    $region39: #{decoder_forward.1} parent=1 // pred_check_branch
      %42 = sbr.rel (0) target = $region41
    $region40: #{decoder_forward.1} parent=1 // pred_region
      _
    $region41: #{decoder_forward.1} parent=1 // pred_fallthru
      _
    // Predicated region
    $region42: #{decoder_forward.1} parent=1 // pred_check
      _
    $region43: #{decoder_forward.1} parent=1 // pred_check_branch
      %44 = sbr.rel (0) target = $region45
    $region44: #{decoder_forward.1} parent=1 // pred_region
      _
    $region45: #{decoder_forward.1} parent=1 // pred_fallthru
      _
    // Predicated region
    $region46: #{decoder_forward.1} parent=1 // pred_check
      _
    $region47: #{decoder_forward.1} parent=1 // pred_check_branch
      %46 = sbr.rel (0) target = $region49
    $region48: #{decoder_forward.1} parent=1 // pred_region
      _
    $region49: #{decoder_forward.1} parent=1 // pred_fallthru
      _
    // Predicated region
    $region50: #{decoder_forward.1} parent=1 // pred_check
      _
    $region51: #{decoder_forward.1} parent=1 // pred_check_branch
      %48 = sbr.rel (0) target = $region53
    $region52: #{decoder_forward.1} parent=1 // pred_region
      _
    $region53: #{decoder_forward.1} parent=1 // pred_fallthru
      _
    // Predicated region
    $region54: #{decoder_forward.1} parent=1 // pred_check
      _
    $region55: #{decoder_forward.1} parent=1 // pred_check_branch
      %50 = sbr.rel (0) target = $region57
    $region56: #{decoder_forward.1} parent=1 // pred_region
      _
    $region57: #{decoder_forward.1} parent=1 // pred_fallthru
      _
    // Predicated region
    $region58: #{decoder_forward.1} parent=1 // pred_check
      _
    $region59: #{decoder_forward.1} parent=1 // pred_check_branch
      %52 = sbr.rel (0) target = $region61
    $region60: #{decoder_forward.1} parent=1 // pred_region
      _
    $region61: #{decoder_forward.1} parent=1 // pred_fallthru
      _
    // Predicated region
    $region62: #{decoder_forward.1} parent=1 // pred_check
      _
    $region63: #{decoder_forward.1} parent=1 // pred_check_branch
      %54 = sbr.rel (0) target = $region65
    $region64: #{decoder_forward.1} parent=1 // pred_region
      _
    $region65: #{decoder_forward.1} parent=1 // pred_fallthru
      _
    // Predicated region
    $region66: #{decoder_forward.1} parent=1 // pred_check
      _
    $region67: #{decoder_forward.1} parent=1 // pred_check_branch
      %56 = sbr.rel (0) target = $region69
    $region68: #{decoder_forward.1} parent=1 // pred_region
      _
    $region69: #{decoder_forward.1} parent=1 // pred_fallthru
      _
    %v57 = vlaneseq
    %v58 = vshrl.u32 %v57, 7
    %v59 = vadd.s32 %v58, 8
    %v60 = vadd.s32 %v58, 16
    %v61 = vadd.s32 %v58, 24
    %v62 = vlaneseq
    %v63 = vand.u32 %v62, 127
    %v64 = vmul.u32 %v63, 8
    %vm65 = vcmp.ge.s32.totalorder %v58, %v64
    %vm66 = vcmp.ge.s32.totalorder %v59, %v64
    %vm67 = vcmp.ge.s32.totalorder %v60, %v64
    %vm68 = vcmp.ge.s32.totalorder %v61, %v64
    %v69 = vadd.s32 %v64, 8
    %vm70 = vcmp.lt.s32.totalorder %v58, %v69
    %vm71 = vcmp.lt.s32.totalorder %v59, %v69
    %vm72 = vcmp.lt.s32.totalorder %v60, %v69
    %vm73 = vcmp.lt.s32.totalorder %v61, %v69
    %vm74 = vmand %vm65, %vm70
    %vm75 = vmand %vm66, %vm71
    %vm76 = vmand %vm67, %vm72
    %vm77 = vmand %vm68, %vm73
    %v78 = vsel %vm74, 1, 0
    %v79 = vsel %vm75, 1, 0
    %v80 = vsel %vm76, 1, 0
    %v81 = vsel %vm77, 1, 0
    %v82 = vcvt.s32.f32 %v78
    %v83 = vcvt.s32.f32 %v79
    %v84 = vcvt.s32.f32 %v80
    %v85 = vcvt.s32.f32 %v81
    %v86 = vmul.u32 %v58, 8
    %vm87 = vcmp.ge.s32.totalorder %v63, %v86
    %v88 = vadd.s32 %v86, 8
    %vm89 = vcmp.lt.s32.totalorder %v63, %v88
    %vm90 = vmand %vm87, %vm89
    %v91 = vsel %vm90, 1, 0
    %v92 = vcvt.s32.f32 %v91
    %v93 = vld [vmem:[%s0] sm:$0xff]
    %v94 = vld [vmem:[%s0 + $0x8] sm:$0xff]
    %v95 = vld [vmem:[%s1] sm:$0xff]
    %v96 = vld [vmem:[%s1 + $0x8] sm:$0xff]
    %v97 = vld [vmem:[%s1 + $0x10] sm:$0xff]
    %v98 = vld [vmem:[%s1 + $0x18] sm:$0xff]
    %v99 = vld [vmem:[%s2] sm:$0x1]
    %v101 = vperm.slane %v99, 0
    %vm103 = vcmask 261120
    %v105 = vsel %vm103, %v93, 0
    %v108 = vsel %vm103, %v94, 0
    %110 = vmatpush.msra.mxu0 0.0
    %111 = vmatpush.msra.mxu0 0.0
    %112 = vmatpush.msra.mxu0 0.0
    %113 = vmatpush.msra.mxu0 0.0
    %114 = vmatpush.msra.mxu0 0.0
    %115 = vmatpush.msra.mxu0 0.0
    %116 = vmatpush.msra.mxu0 0.0
    %117 = vmatpush.msra.mxu0 0.0
    %118 = vmatpush.msra.mxu0 0.0
    %119 = vmatpush.msra.mxu0 0.0
    %120 = vmatpush.msra.mxu0 0.0
    %121 = vmatpush.msra.mxu0 0.0
    %122 = vmatpush.msra.mxu0 %v98
    %123 = vmatpush.msra.mxu0 %v97
    %124 = vmatpush.msra.mxu0 %v96
    %125 = vmatpush.msra.mxu0 %v95
    %126 = vmatmul.f32.gmra.mxu0 %v105
    %v127 = vpop.f32.mrf.mxu0
    %v128 = vadd.f32 %v101, %v127
    %129 = vmatmul.f32.gmra.mxu0 %v108
    %v130 = vpop.f32.mrf.mxu0
    %v131 = vadd.f32 %v101, %v130
    %132 = vdwg.mxu0
    %s133 = scalar_lea.vmem %s1, 32
    %v134 = vld [vmem:[%s133] sm:$0xff]
    %v135 = vld [vmem:[%s133 + $0x8] sm:$0xff]
    %v136 = vld [vmem:[%s133 + $0x10] sm:$0xff]
    %v137 = vld [vmem:[%s133 + $0x18] sm:$0xff]
    %s138 = scalar_lea.vmem %s2, 1
    %v139 = vld [vmem:[%s138] sm:$0x1]
    %v141 = vperm.slane %v139, 0
    %143 = vmatpush.msra.mxu0 0.0
    %144 = vmatpush.msra.mxu0 0.0
    %145 = vmatpush.msra.mxu0 0.0
    %146 = vmatpush.msra.mxu0 0.0
    %147 = vmatpush.msra.mxu0 0.0
    %148 = vmatpush.msra.mxu0 0.0
    %149 = vmatpush.msra.mxu0 0.0
    %150 = vmatpush.msra.mxu0 0.0
    %151 = vmatpush.msra.mxu0 0.0
    %152 = vmatpush.msra.mxu0 0.0
    %153 = vmatpush.msra.mxu0 0.0
    %154 = vmatpush.msra.mxu0 0.0
    %155 = vmatpush.msra.mxu0 %v137
    %156 = vmatpush.msra.mxu0 %v136
    %157 = vmatpush.msra.mxu0 %v135
    %158 = vmatpush.msra.mxu0 %v134
    %159 = vmatmul.f32.gmra.mxu0 %v105
    %v160 = vpop.f32.mrf.mxu0
    %v161 = vadd.f32 %v141, %v160
    %162 = vmatmul.f32.gmra.mxu0 %v108
    %v163 = vpop.f32.mrf.mxu0
    %v164 = vadd.f32 %v141, %v163
    %165 = vdwg.mxu0
    %s166 = scalar_lea.vmem %s1, 64
    %v167 = vld [vmem:[%s166] sm:$0xff]
    %v168 = vld [vmem:[%s166 + $0x8] sm:$0xff]
    %v169 = vld [vmem:[%s166 + $0x10] sm:$0xff]
    %v170 = vld [vmem:[%s166 + $0x18] sm:$0xff]
    %s171 = scalar_lea.vmem %s2, 2
    %v172 = vld [vmem:[%s171] sm:$0x1]
    %v174 = vperm.slane %v172, 0
    %176 = vmatpush.msra.mxu0 0.0
    %177 = vmatpush.msra.mxu0 0.0
    %178 = vmatpush.msra.mxu0 0.0
    %179 = vmatpush.msra.mxu0 0.0
    %180 = vmatpush.msra.mxu0 0.0
    %181 = vmatpush.msra.mxu0 0.0
    %182 = vmatpush.msra.mxu0 0.0
    %183 = vmatpush.msra.mxu0 0.0
    %184 = vmatpush.msra.mxu0 0.0
    %185 = vmatpush.msra.mxu0 0.0
    %186 = vmatpush.msra.mxu0 0.0
    %187 = vmatpush.msra.mxu0 0.0
    %188 = vmatpush.msra.mxu0 %v170
    %189 = vmatpush.msra.mxu0 %v169
    %190 = vmatpush.msra.mxu0 %v168
    %191 = vmatpush.msra.mxu0 %v167
    %192 = vmatmul.f32.gmra.mxu0 %v105
    %v193 = vpop.f32.mrf.mxu0
    %v194 = vadd.f32 %v174, %v193
    %195 = vmatmul.f32.gmra.mxu0 %v108
    %v196 = vpop.f32.mrf.mxu0
    %v197 = vadd.f32 %v174, %v196
    %198 = vdwg.mxu0
    %v199 = vmul.f32 %v128, %v161
    %v200 = vmul.f32 %v128, %v164
    %v201 = vmul.f32 %v131, %v161
    %v202 = vmul.f32 %v131, %v164
    %v204 = vsel %vm103, %v199, 0
    %v207 = vsel %vm103, %v200, 0
    %v210 = vsel %vm103, %v201, 0
    %v213 = vsel %vm103, %v202, 0
    %215 = vmatpush.msra.mxu0 0.0
    %216 = vmatpush.msra.mxu0 0.0
    %217 = vmatpush.msra.mxu0 0.0
    %218 = vmatpush.msra.mxu0 0.0
    %219 = vmatpush.msra.mxu0 0.0
    %220 = vmatpush.msra.mxu0 0.0
    %221 = vmatpush.msra.mxu0 0.0
    %222 = vmatpush.msra.mxu0 0.0
    %223 = vmatpush.msra.mxu0 0.0
    %224 = vmatpush.msra.mxu0 0.0
    %225 = vmatpush.msra.mxu0 0.0
    %226 = vmatpush.msra.mxu0 0.0
    %227 = vmatpush.msra.mxu0 %v85
    %228 = vmatpush.msra.mxu0 %v84
    %229 = vmatpush.msra.mxu0 %v83
    %230 = vmatpush.msra.mxu0 %v82
    %231 = vmatmul.f32.gmra.mxu0 %v204
    %v232 = vpop.f32.mrf.mxu0
    %v233 = vadd.f32 0.0, %v232
    %234 = vmatmul.f32.gmra.mxu0 %v207
    %v235 = vpop.f32.mrf.mxu0
    %v236 = vadd.f32 0.0, %v235
    %237 = vmatmul.f32.gmra.mxu0 %v210
    %v238 = vpop.f32.mrf.mxu0
    %v239 = vadd.f32 0.0, %v238
    %240 = vmatmul.f32.gmra.mxu0 %v213
    %v241 = vpop.f32.mrf.mxu0
    %v242 = vadd.f32 0.0, %v241
    %243 = vdwg.mxu0
    %vm244 = vcmask 31744
    %v245 = vsel %vm244, %v233, -inf
    %v246 = vsel %vm244, %v236, -inf
    %v247 = vmax.f32 %v245, %v246
    %v248 = vsel %vm244, %v239, -inf
    %v249 = vsel %vm244, %v242, -inf
    %v250 = vmax.f32 %v248, %v249
    %v251 = vsub.f32 %v233, %v247
    %v252 = vsub.f32 %v236, %v247
    %v253 = vsub.f32 %v239, %v250
    %v254 = vsub.f32 %v242, %v250
    %v255 = vmul.f32 %v251, 1.442695
    %v256 = vpow.pop %v255
    %v257 = vmul.f32 %v252, 1.442695
    %v258 = vpow.pop %v257
    %v259 = vmul.f32 %v253, 1.442695
    %v260 = vpow.pop %v259
    %v261 = vmul.f32 %v254, 1.442695
    %v262 = vpow.pop %v261
    %v263 = vsel %vm244, %v256, 0.0
    %v264 = vsel %vm244, %v258, 0.0
    %v265 = vadd.f32 %v263, %v264
    %v266 = vsel %vm244, %v260, 0.0
    %v267 = vsel %vm244, %v262, 0.0
    %v268 = vadd.f32 %v266, %v267
    %v269 = vrcp.pop %v265
    %v270 = vrcp.pop %v268
    %v271 = vmul.f32 %v256, %v269
    %v272 = vmul.f32 %v258, %v269
    %v273 = vmul.f32 %v260, %v270
    %v274 = vmul.f32 %v262, %v270
    %v276 = vsel %vm244, %v271, 0
    %v279 = vsel %vm244, %v272, 0
    %v282 = vsel %vm244, %v273, 0
    %v285 = vsel %vm244, %v274, 0
    %vm287 = vcmask 1043456
    %v289 = vsel %vm287, %v92, 0
    %291 = vmatpush.msra.mxu0 0.0
    %292 = vmatpush.msra.mxu0 0.0
    %293 = vmatpush.msra.mxu0 0.0
    %294 = vmatpush.msra.mxu0 0.0
    %295 = vmatpush.msra.mxu0 0.0
    %296 = vmatpush.msra.mxu0 0.0
    %297 = vmatpush.msra.mxu0 0.0
    %298 = vmatpush.msra.mxu0 0.0
    %299 = vmatpush.msra.mxu0 0.0
    %300 = vmatpush.msra.mxu0 0.0
    %301 = vmatpush.msra.mxu0 0.0
    %302 = vmatpush.msra.mxu0 0.0
    %303 = vmatpush.msra.mxu0 0.0
    %304 = vmatpush.msra.mxu0 0.0
    %305 = vmatpush.msra.mxu0 0.0
    %306 = vmatpush.msra.mxu0 %v289
    %307 = vmatmul.f32.gmra.mxu0 %v276
    %v308 = vpop.f32.mrf.mxu0
    %v309 = vadd.f32 0.0, %v308
    %310 = vmatmul.f32.gmra.mxu0 %v279
    %v311 = vpop.f32.mrf.mxu0
    %v312 = vadd.f32 0.0, %v311
    %313 = vmatmul.f32.gmra.mxu0 %v282
    %v314 = vpop.f32.mrf.mxu0
    %v315 = vadd.f32 0.0, %v314
    %316 = vmatmul.f32.gmra.mxu0 %v285
    %v317 = vpop.f32.mrf.mxu0
    %v318 = vadd.f32 0.0, %v317
    %319 = vdwg.mxu0
    %v320 = vmul.f32 %v309, %v194
    %v321 = vmul.f32 %v312, %v197
    %v322 = vmul.f32 %v315, %v194
    %v323 = vmul.f32 %v318, %v197
    %v324 = vsel %vm103, %v320, 0.0
    %v325 = vsel %vm103, %v321, 0.0
    %v326 = vadd.f32 %v324, %v325
    %v327 = vsel %vm103, %v322, 0.0
    %v328 = vsel %vm103, %v323, 0.0
    %v329 = vadd.f32 %v327, %v328
    %v330 = vld [vmem:[%s3] sm:$0xff]
    %v331 = vld [vmem:[%s3 + $0x8] sm:$0xff]
    %v332 = vld [vmem:[%s3 + $0x10] sm:$0xff]
    %v333 = vld [vmem:[%s3 + $0x18] sm:$0xff]
    %v334 = vld [vmem:[%s4] sm:$0x1]
    %v336 = vperm.slane %v334, 0
    %v339 = vsel %vm103, %v326, 0
    %v342 = vsel %vm103, %v329, 0
    %344 = vmatpush.msra.mxu0 0.0
    %345 = vmatpush.msra.mxu0 0.0
    %346 = vmatpush.msra.mxu0 0.0
    %347 = vmatpush.msra.mxu0 0.0
    %348 = vmatpush.msra.mxu0 0.0
    %349 = vmatpush.msra.mxu0 0.0
    %350 = vmatpush.msra.mxu0 0.0
    %351 = vmatpush.msra.mxu0 0.0
    %352 = vmatpush.msra.mxu0 0.0
    %353 = vmatpush.msra.mxu0 0.0
    %354 = vmatpush.msra.mxu0 0.0
    %355 = vmatpush.msra.mxu0 0.0
    %356 = vmatpush.msra.mxu0 %v333
    %357 = vmatpush.msra.mxu0 %v332
    %358 = vmatpush.msra.mxu0 %v331
    %359 = vmatpush.msra.mxu0 %v330
    %360 = vmatmul.f32.gmra.mxu0 %v339
    %v361 = vpop.f32.mrf.mxu0
    %v362 = vadd.f32 %v336, %v361
    %363 = vmatmul.f32.gmra.mxu0 %v342
    %v364 = vpop.f32.mrf.mxu0
    %v365 = vadd.f32 %v336, %v364
    %366 = vdwg.mxu0
    %v367 = vadd.f32 %v93, %v362
    %v368 = vadd.f32 %v94, %v365
    %v369 = vld [vmem:[%s13] sm:$0x1]
    %v370 = vld [vmem:[%s14] sm:$0x1]
    %v371 = vsel %vm103, %v367, 0.0
    %372 = vadd.xlane.f32.xlu0 %v371
    %v373 = vpop.xlane.xlu0 %372
    %v374 = vsel %vm103, %v368, 0.0
    %375 = vadd.xlane.f32.xlu0 %v374
    %v376 = vpop.xlane.xlu0 %375
    %v377 = vrcp.pop 32.0
    %v378 = vmul.f32 32.0, %v377
    %v379 = vsub.f32 1.0, %v378
    %v380 = vmul.f32 %v377, %v379
    %v381 = vadd.f32 %v377, %v380
    %vm382 = vweird.f32 %v377
    %v383 = vsel %vm382, %v377, %v381
    %v384 = vmul.f32 %v373, %v383
    %v385 = vmul.f32 %v376, %v383
    %v386 = vsub.f32 %v367, %v384
    %v387 = vsub.f32 %v368, %v385
    %v388 = vmul.f32 %v386, %v386
    %v389 = vmul.f32 %v387, %v387
    %v390 = vsel %vm103, %v388, 0.0
    %391 = vadd.xlane.f32.xlu0 %v390
    %v392 = vpop.xlane.xlu0 %391
    %v393 = vsel %vm103, %v389, 0.0
    %394 = vadd.xlane.f32.xlu0 %v393
    %v395 = vpop.xlane.xlu0 %394
    %v396 = vmul.f32 %v392, %v383
    %v397 = vmul.f32 %v395, %v383
    %v398 = vadd.f32 %v396, 1e-05
    %v399 = vadd.f32 %v397, 1e-05
    %v400 = vrsqrt.pop %v398
    %v401 = vmul.f32 %v400, %v398
    %v402 = vmul.f32 %v401, %v400
    %v403 = vmul.f32 0.5, %v402
    %v404 = vsub.f32 1.5, %v403
    %v405 = vmul.f32 %v400, %v404
    %vm406 = vweird.f32 %v398
    %vm407 = vweird.f32 %v400
    %vm408 = vmor %vm406, %vm407
    %v409 = vsel %vm408, %v400, %v405
    %v410 = vrsqrt.pop %v399
    %v411 = vmul.f32 %v410, %v399
    %v412 = vmul.f32 %v411, %v410
    %v413 = vmul.f32 0.5, %v412
    %v414 = vsub.f32 1.5, %v413
    %v415 = vmul.f32 %v410, %v414
    %vm416 = vweird.f32 %v399
    %vm417 = vweird.f32 %v410
    %vm418 = vmor %vm416, %vm417
    %v419 = vsel %vm418, %v410, %v415
    %v420 = vmul.f32 %v386, %v409
    %v421 = vmul.f32 %v387, %v419
    %v423 = vperm.slane %v369, 0
    %v425 = vmul.f32 %v420, %v423
    %v426 = vmul.f32 %v421, %v423
    %v428 = vperm.slane %v370, 0
    %v430 = vadd.f32 %v425, %v428
    %v431 = vadd.f32 %v426, %v428
    %v432 = vld [vmem:[%s5] sm:$0xff]
    %v433 = vld [vmem:[%s5 + $0x8] sm:$0xff]
    %v434 = vld [vmem:[%s5 + $0x10] sm:$0xff]
    %v435 = vld [vmem:[%s5 + $0x18] sm:$0xff]
    %v436 = vld [vmem:[%s6] sm:$0x1]
    %v438 = vperm.slane %v436, 0
    %v441 = vsel %vm103, %v430, 0
    %v444 = vsel %vm103, %v431, 0
    %446 = vmatpush.msra.mxu0 0.0
    %447 = vmatpush.msra.mxu0 0.0
    %448 = vmatpush.msra.mxu0 0.0
    %449 = vmatpush.msra.mxu0 0.0
    %450 = vmatpush.msra.mxu0 0.0
    %451 = vmatpush.msra.mxu0 0.0
    %452 = vmatpush.msra.mxu0 0.0
    %453 = vmatpush.msra.mxu0 0.0
    %454 = vmatpush.msra.mxu0 0.0
    %455 = vmatpush.msra.mxu0 0.0
    %456 = vmatpush.msra.mxu0 0.0
    %457 = vmatpush.msra.mxu0 0.0
    %458 = vmatpush.msra.mxu0 %v435
    %459 = vmatpush.msra.mxu0 %v434
    %460 = vmatpush.msra.mxu0 %v433
    %461 = vmatpush.msra.mxu0 %v432
    %462 = vmatmul.f32.gmra.mxu0 %v441
    %v463 = vpop.f32.mrf.mxu0
    %v464 = vadd.f32 %v438, %v463
    %465 = vmatmul.f32.gmra.mxu0 %v444
    %v466 = vpop.f32.mrf.mxu0
    %v467 = vadd.f32 %v438, %v466
    %468 = vdwg.mxu0
    %s469 = scalar_lea.vmem %s5, 32
    %v470 = vld [vmem:[%s469] sm:$0xff]
    %v471 = vld [vmem:[%s469 + $0x8] sm:$0xff]
    %v472 = vld [vmem:[%s469 + $0x10] sm:$0xff]
    %v473 = vld [vmem:[%s469 + $0x18] sm:$0xff]
    %s474 = scalar_lea.vmem %s6, 1
    %v475 = vld [vmem:[%s474] sm:$0x1]
    %v477 = vperm.slane %v475, 0
    %479 = vmatpush.msra.mxu0 0.0
    %480 = vmatpush.msra.mxu0 0.0
    %481 = vmatpush.msra.mxu0 0.0
    %482 = vmatpush.msra.mxu0 0.0
    %483 = vmatpush.msra.mxu0 0.0
    %484 = vmatpush.msra.mxu0 0.0
    %485 = vmatpush.msra.mxu0 0.0
    %486 = vmatpush.msra.mxu0 0.0
    %487 = vmatpush.msra.mxu0 0.0
    %488 = vmatpush.msra.mxu0 0.0
    %489 = vmatpush.msra.mxu0 0.0
    %490 = vmatpush.msra.mxu0 0.0
    %491 = vmatpush.msra.mxu0 %v473
    %492 = vmatpush.msra.mxu0 %v472
    %493 = vmatpush.msra.mxu0 %v471
    %494 = vmatpush.msra.mxu0 %v470
    %495 = vmatmul.f32.gmra.mxu0 %v105
    %v496 = vpop.f32.mrf.mxu0
    %v497 = vadd.f32 %v477, %v496
    %498 = vmatmul.f32.gmra.mxu0 %v108
    %v499 = vpop.f32.mrf.mxu0
    %v500 = vadd.f32 %v477, %v499
    %501 = vdwg.mxu0
    %s502 = scalar_lea.vmem %s5, 64
    %v503 = vld [vmem:[%s502] sm:$0xff]
    %v504 = vld [vmem:[%s502 + $0x8] sm:$0xff]
    %v505 = vld [vmem:[%s502 + $0x10] sm:$0xff]
    %v506 = vld [vmem:[%s502 + $0x18] sm:$0xff]
    %s507 = scalar_lea.vmem %s6, 2
    %v508 = vld [vmem:[%s507] sm:$0x1]
    %v510 = vperm.slane %v508, 0
    %512 = vmatpush.msra.mxu0 0.0
    %513 = vmatpush.msra.mxu0 0.0
    %514 = vmatpush.msra.mxu0 0.0
    %515 = vmatpush.msra.mxu0 0.0
    %516 = vmatpush.msra.mxu0 0.0
    %517 = vmatpush.msra.mxu0 0.0
    %518 = vmatpush.msra.mxu0 0.0
    %519 = vmatpush.msra.mxu0 0.0
    %520 = vmatpush.msra.mxu0 0.0
    %521 = vmatpush.msra.mxu0 0.0
    %522 = vmatpush.msra.mxu0 0.0
    %523 = vmatpush.msra.mxu0 0.0
    %524 = vmatpush.msra.mxu0 %v506
    %525 = vmatpush.msra.mxu0 %v505
    %526 = vmatpush.msra.mxu0 %v504
    %527 = vmatpush.msra.mxu0 %v503
    %528 = vmatmul.f32.gmra.mxu0 %v105
    %v529 = vpop.f32.mrf.mxu0
    %v530 = vadd.f32 %v510, %v529
    %531 = vmatmul.f32.gmra.mxu0 %v108
    %v532 = vpop.f32.mrf.mxu0
    %v533 = vadd.f32 %v510, %v532
    %534 = vdwg.mxu0
    %v535 = vmul.f32 %v464, %v497
    %v536 = vmul.f32 %v464, %v500
    %v537 = vmul.f32 %v467, %v497
    %v538 = vmul.f32 %v467, %v500
    %v540 = vsel %vm103, %v535, 0
    %v543 = vsel %vm103, %v536, 0
    %v546 = vsel %vm103, %v537, 0
    %v549 = vsel %vm103, %v538, 0
    %551 = vmatpush.msra.mxu0 0.0
    %552 = vmatpush.msra.mxu0 0.0
    %553 = vmatpush.msra.mxu0 0.0
    %554 = vmatpush.msra.mxu0 0.0
    %555 = vmatpush.msra.mxu0 0.0
    %556 = vmatpush.msra.mxu0 0.0
    %557 = vmatpush.msra.mxu0 0.0
    %558 = vmatpush.msra.mxu0 0.0
    %559 = vmatpush.msra.mxu0 0.0
    %560 = vmatpush.msra.mxu0 0.0
    %561 = vmatpush.msra.mxu0 0.0
    %562 = vmatpush.msra.mxu0 0.0
    %563 = vmatpush.msra.mxu0 %v85
    %564 = vmatpush.msra.mxu0 %v84
    %565 = vmatpush.msra.mxu0 %v83
    %566 = vmatpush.msra.mxu0 %v82
    %567 = vmatmul.f32.gmra.mxu0 %v540
    %v568 = vpop.f32.mrf.mxu0
    %v569 = vadd.f32 0.0, %v568
    %570 = vmatmul.f32.gmra.mxu0 %v543
    %v571 = vpop.f32.mrf.mxu0
    %v572 = vadd.f32 0.0, %v571
    %573 = vmatmul.f32.gmra.mxu0 %v546
    %v574 = vpop.f32.mrf.mxu0
    %v575 = vadd.f32 0.0, %v574
    %576 = vmatmul.f32.gmra.mxu0 %v549
    %v577 = vpop.f32.mrf.mxu0
    %v578 = vadd.f32 0.0, %v577
    %579 = vdwg.mxu0
    %v580 = vsel %vm244, %v569, -inf
    %v581 = vsel %vm244, %v572, -inf
    %v582 = vmax.f32 %v580, %v581
    %v583 = vsel %vm244, %v575, -inf
    %v584 = vsel %vm244, %v578, -inf
    %v585 = vmax.f32 %v583, %v584
    %v586 = vsub.f32 %v569, %v582
    %v587 = vsub.f32 %v572, %v582
    %v588 = vsub.f32 %v575, %v585
    %v589 = vsub.f32 %v578, %v585
    %v590 = vmul.f32 %v586, 1.442695
    %v591 = vpow.pop %v590
    %v592 = vmul.f32 %v587, 1.442695
    %v593 = vpow.pop %v592
    %v594 = vmul.f32 %v588, 1.442695
    %v595 = vpow.pop %v594
    %v596 = vmul.f32 %v589, 1.442695
    %v597 = vpow.pop %v596
    %v598 = vsel %vm244, %v591, 0.0
    %v599 = vsel %vm244, %v593, 0.0
    %v600 = vadd.f32 %v598, %v599
    %v601 = vsel %vm244, %v595, 0.0
    %v602 = vsel %vm244, %v597, 0.0
    %v603 = vadd.f32 %v601, %v602
    %v604 = vrcp.pop %v600
    %v605 = vrcp.pop %v603
    %v606 = vmul.f32 %v591, %v604
    %v607 = vmul.f32 %v593, %v604
    %v608 = vmul.f32 %v595, %v605
    %v609 = vmul.f32 %v597, %v605
    %v611 = vsel %vm244, %v606, 0
    %v614 = vsel %vm244, %v607, 0
    %v617 = vsel %vm244, %v608, 0
    %v620 = vsel %vm244, %v609, 0
    %622 = vmatpush.msra.mxu0 0.0
    %623 = vmatpush.msra.mxu0 0.0
    %624 = vmatpush.msra.mxu0 0.0
    %625 = vmatpush.msra.mxu0 0.0
    %626 = vmatpush.msra.mxu0 0.0
    %627 = vmatpush.msra.mxu0 0.0
    %628 = vmatpush.msra.mxu0 0.0
    %629 = vmatpush.msra.mxu0 0.0
    %630 = vmatpush.msra.mxu0 0.0
    %631 = vmatpush.msra.mxu0 0.0
    %632 = vmatpush.msra.mxu0 0.0
    %633 = vmatpush.msra.mxu0 0.0
    %634 = vmatpush.msra.mxu0 0.0
    %635 = vmatpush.msra.mxu0 0.0
    %636 = vmatpush.msra.mxu0 0.0
    %637 = vmatpush.msra.mxu0 %v289
    %638 = vmatmul.f32.gmra.mxu0 %v611
    %v639 = vpop.f32.mrf.mxu0
    %v640 = vadd.f32 0.0, %v639
    %641 = vmatmul.f32.gmra.mxu0 %v614
    %v642 = vpop.f32.mrf.mxu0
    %v643 = vadd.f32 0.0, %v642
    %644 = vmatmul.f32.gmra.mxu0 %v617
    %v645 = vpop.f32.mrf.mxu0
    %v646 = vadd.f32 0.0, %v645
    %647 = vmatmul.f32.gmra.mxu0 %v620
    %v648 = vpop.f32.mrf.mxu0
    %v649 = vadd.f32 0.0, %v648
    %650 = vdwg.mxu0
    %v651 = vmul.f32 %v640, %v530
    %v652 = vmul.f32 %v643, %v533
    %v653 = vmul.f32 %v646, %v530
    %v654 = vmul.f32 %v649, %v533
    %v655 = vsel %vm103, %v651, 0.0
    %v656 = vsel %vm103, %v652, 0.0
    %v657 = vadd.f32 %v655, %v656
    %v658 = vsel %vm103, %v653, 0.0
    %v659 = vsel %vm103, %v654, 0.0
    %v660 = vadd.f32 %v658, %v659
    %v661 = vld [vmem:[%s7] sm:$0xff]
    %v662 = vld [vmem:[%s7 + $0x8] sm:$0xff]
    %v663 = vld [vmem:[%s7 + $0x10] sm:$0xff]
    %v664 = vld [vmem:[%s7 + $0x18] sm:$0xff]
    %v665 = vld [vmem:[%s8] sm:$0x1]
    %v667 = vperm.slane %v665, 0
    %v670 = vsel %vm103, %v657, 0
    %v673 = vsel %vm103, %v660, 0
    %675 = vmatpush.msra.mxu0 0.0
    %676 = vmatpush.msra.mxu0 0.0
    %677 = vmatpush.msra.mxu0 0.0
    %678 = vmatpush.msra.mxu0 0.0
    %679 = vmatpush.msra.mxu0 0.0
    %680 = vmatpush.msra.mxu0 0.0
    %681 = vmatpush.msra.mxu0 0.0
    %682 = vmatpush.msra.mxu0 0.0
    %683 = vmatpush.msra.mxu0 0.0
    %684 = vmatpush.msra.mxu0 0.0
    %685 = vmatpush.msra.mxu0 0.0
    %686 = vmatpush.msra.mxu0 0.0
    %687 = vmatpush.msra.mxu0 %v664
    %688 = vmatpush.msra.mxu0 %v663
    %689 = vmatpush.msra.mxu0 %v662
    %690 = vmatpush.msra.mxu0 %v661
    %691 = vmatmul.f32.gmra.mxu0 %v670
    %v692 = vpop.f32.mrf.mxu0
    %v693 = vadd.f32 %v667, %v692
    %694 = vmatmul.f32.gmra.mxu0 %v673
    %v695 = vpop.f32.mrf.mxu0
    %v696 = vadd.f32 %v667, %v695
    %697 = vdwg.mxu0
    %v698 = vadd.f32 %v430, %v693
    %v699 = vadd.f32 %v431, %v696
    %s700 = scalar_lea.vmem %s13, 1
    %v701 = vld [vmem:[%s700] sm:$0x1]
    %s702 = scalar_lea.vmem %s14, 1
    %v703 = vld [vmem:[%s702] sm:$0x1]
    %v704 = vsel %vm103, %v698, 0.0
    %705 = vadd.xlane.f32.xlu0 %v704
    %v706 = vpop.xlane.xlu0 %705
    %v707 = vsel %vm103, %v699, 0.0
    %708 = vadd.xlane.f32.xlu0 %v707
    %v709 = vpop.xlane.xlu0 %708
    %v710 = vmul.f32 %v706, %v383
    %v711 = vmul.f32 %v709, %v383
    %v712 = vsub.f32 %v698, %v710
    %v713 = vsub.f32 %v699, %v711
    %v714 = vmul.f32 %v712, %v712
    %v715 = vmul.f32 %v713, %v713
    %v716 = vsel %vm103, %v714, 0.0
    %717 = vadd.xlane.f32.xlu0 %v716
    %v718 = vpop.xlane.xlu0 %717
    %v719 = vsel %vm103, %v715, 0.0
    %720 = vadd.xlane.f32.xlu0 %v719
    %v721 = vpop.xlane.xlu0 %720
    %v722 = vmul.f32 %v718, %v383
    %v723 = vmul.f32 %v721, %v383
    %v724 = vadd.f32 %v722, 1e-05
    %v725 = vadd.f32 %v723, 1e-05
    %v726 = vrsqrt.pop %v724
    %v727 = vmul.f32 %v726, %v724
    %v728 = vmul.f32 %v727, %v726
    %v729 = vmul.f32 0.5, %v728
    %v730 = vsub.f32 1.5, %v729
    %v731 = vmul.f32 %v726, %v730
    %vm732 = vweird.f32 %v724
    %vm733 = vweird.f32 %v726
    %vm734 = vmor %vm732, %vm733
    %v735 = vsel %vm734, %v726, %v731
    %v736 = vrsqrt.pop %v725
    %v737 = vmul.f32 %v736, %v725
    %v738 = vmul.f32 %v737, %v736
    %v739 = vmul.f32 0.5, %v738
    %v740 = vsub.f32 1.5, %v739
    %v741 = vmul.f32 %v736, %v740
    %vm742 = vweird.f32 %v725
    %vm743 = vweird.f32 %v736
    %vm744 = vmor %vm742, %vm743
    %v745 = vsel %vm744, %v736, %v741
    %v746 = vmul.f32 %v712, %v735
    %v747 = vmul.f32 %v713, %v745
    %v749 = vperm.slane %v701, 0
    %v751 = vmul.f32 %v746, %v749
    %v752 = vmul.f32 %v747, %v749
    %v754 = vperm.slane %v703, 0
    %v756 = vadd.f32 %v751, %v754
    %v757 = vadd.f32 %v752, %v754
    %v758 = vld [vmem:[%s9] sm:$0xff]
    %v759 = vld [vmem:[%s9 + $0x8] sm:$0xff]
    %v760 = vld [vmem:[%s9 + $0x10] sm:$0xff]
    %v761 = vld [vmem:[%s9 + $0x18] sm:$0xff]
    %v762 = vld [vmem:[%s10] sm:$0x1]
    %v764 = vperm.slane %v762, 0
    %v767 = vsel %vm103, %v756, 0
    %v770 = vsel %vm103, %v757, 0
    %772 = vmatpush.msra.mxu0 0.0
    %773 = vmatpush.msra.mxu0 0.0
    %774 = vmatpush.msra.mxu0 0.0
    %775 = vmatpush.msra.mxu0 0.0
    %776 = vmatpush.msra.mxu0 0.0
    %777 = vmatpush.msra.mxu0 0.0
    %778 = vmatpush.msra.mxu0 0.0
    %779 = vmatpush.msra.mxu0 0.0
    %780 = vmatpush.msra.mxu0 0.0
    %781 = vmatpush.msra.mxu0 0.0
    %782 = vmatpush.msra.mxu0 0.0
    %783 = vmatpush.msra.mxu0 0.0
    %784 = vmatpush.msra.mxu0 %v761
    %785 = vmatpush.msra.mxu0 %v760
    %786 = vmatpush.msra.mxu0 %v759
    %787 = vmatpush.msra.mxu0 %v758
    %788 = vmatmul.f32.gmra.mxu0 %v767
    %v789 = vpop.f32.mrf.mxu0
    %v790 = vadd.f32 %v764, %v789
    %791 = vmatmul.f32.gmra.mxu0 %v770
    %v792 = vpop.f32.mrf.mxu0
    %v793 = vadd.f32 %v764, %v792
    %794 = vdwg.mxu0
    %v795 = vmax.f32 %v790, 0.0
    %v796 = vmax.f32 %v793, 0.0
    %v797 = vld [vmem:[%s11] sm:$0xff]
    %v798 = vld [vmem:[%s11 + $0x8] sm:$0xff]
    %v799 = vld [vmem:[%s11 + $0x10] sm:$0xff]
    %v800 = vld [vmem:[%s11 + $0x18] sm:$0xff]
    %v801 = vld [vmem:[%s11 + $0x20] sm:$0xff]
    %v802 = vld [vmem:[%s11 + $0x28] sm:$0xff]
    %v803 = vld [vmem:[%s11 + $0x30] sm:$0xff]
    %v804 = vld [vmem:[%s11 + $0x38] sm:$0xff]
    %v805 = vld [vmem:[%s11 + $0x40] sm:$0xff]
    %v806 = vld [vmem:[%s11 + $0x48] sm:$0xff]
    %v807 = vld [vmem:[%s11 + $0x50] sm:$0xff]
    %v808 = vld [vmem:[%s11 + $0x58] sm:$0xff]
    %v809 = vld [vmem:[%s11 + $0x60] sm:$0xff]
    %v810 = vld [vmem:[%s11 + $0x68] sm:$0xff]
    %v811 = vld [vmem:[%s11 + $0x70] sm:$0xff]
    %v812 = vld [vmem:[%s11 + $0x78] sm:$0xff]
    %v813 = vld [vmem:[%s12] sm:$0x1]
    %v815 = vperm.slane %v813, 0
    %817 = vmatpush.msra.mxu0 %v812
    %818 = vmatpush.msra.mxu0 %v811
    %819 = vmatpush.msra.mxu0 %v810
    %820 = vmatpush.msra.mxu0 %v809
    %821 = vmatpush.msra.mxu0 %v808
    %822 = vmatpush.msra.mxu0 %v807
    %823 = vmatpush.msra.mxu0 %v806
    %824 = vmatpush.msra.mxu0 %v805
    %825 = vmatpush.msra.mxu0 %v804
    %826 = vmatpush.msra.mxu0 %v803
    %827 = vmatpush.msra.mxu0 %v802
    %828 = vmatpush.msra.mxu0 %v801
    %829 = vmatpush.msra.mxu0 %v800
    %830 = vmatpush.msra.mxu0 %v799
    %831 = vmatpush.msra.mxu0 %v798
    %832 = vmatpush.msra.mxu0 %v797
    %833 = vmatmul.f32.gmra.mxu0 %v795
    %v834 = vpop.f32.mrf.mxu0
    %v835 = vadd.f32 %v815, %v834
    %836 = vmatmul.f32.gmra.mxu0 %v796
    %v837 = vpop.f32.mrf.mxu0
    %v838 = vadd.f32 %v815, %v837
    %839 = vdwg.mxu0
    %v840 = vadd.f32 %v756, %v835
    %v841 = vadd.f32 %v757, %v838
    %s842 = scalar_lea.vmem %s13, 2
    %v843 = vld [vmem:[%s842] sm:$0x1]
    %s844 = scalar_lea.vmem %s14, 2
    %v845 = vld [vmem:[%s844] sm:$0x1]
    %v846 = vsel %vm103, %v840, 0.0
    %847 = vadd.xlane.f32.xlu0 %v846
    %v848 = vpop.xlane.xlu0 %847
    %v849 = vsel %vm103, %v841, 0.0
    %850 = vadd.xlane.f32.xlu0 %v849
    %v851 = vpop.xlane.xlu0 %850
    %v852 = vmul.f32 %v848, %v383
    %v853 = vmul.f32 %v851, %v383
    %v854 = vsub.f32 %v840, %v852
    %v855 = vsub.f32 %v841, %v853
    %v856 = vmul.f32 %v854, %v854
    %v857 = vmul.f32 %v855, %v855
    %v858 = vsel %vm103, %v856, 0.0
    %859 = vadd.xlane.f32.xlu0 %v858
    %v860 = vpop.xlane.xlu0 %859
    %v861 = vsel %vm103, %v857, 0.0
    %862 = vadd.xlane.f32.xlu0 %v861
    %v863 = vpop.xlane.xlu0 %862
    %v864 = vmul.f32 %v860, %v383
    %v865 = vmul.f32 %v863, %v383
    %v866 = vadd.f32 %v864, 1e-05
    %v867 = vadd.f32 %v865, 1e-05
    %v868 = vrsqrt.pop %v866
    %v869 = vmul.f32 %v868, %v866
    %v870 = vmul.f32 %v869, %v868
    %v871 = vmul.f32 0.5, %v870
    %v872 = vsub.f32 1.5, %v871
    %v873 = vmul.f32 %v868, %v872
    %vm874 = vweird.f32 %v866
    %vm875 = vweird.f32 %v868
    %vm876 = vmor %vm874, %vm875
    %v877 = vsel %vm876, %v868, %v873
    %v878 = vrsqrt.pop %v867
    %v879 = vmul.f32 %v878, %v867
    %v880 = vmul.f32 %v879, %v878
    %v881 = vmul.f32 0.5, %v880
    %v882 = vsub.f32 1.5, %v881
    %v883 = vmul.f32 %v878, %v882
    %vm884 = vweird.f32 %v867
    %vm885 = vweird.f32 %v878
    %vm886 = vmor %vm884, %vm885
    %v887 = vsel %vm886, %v878, %v883
    %v888 = vmul.f32 %v854, %v877
    %v889 = vmul.f32 %v855, %v887
    %v891 = vperm.slane %v843, 0
    %v893 = vmul.f32 %v888, %v891
    %v894 = vmul.f32 %v889, %v891
    %v896 = vperm.slane %v845, 0
    %v898 = vadd.f32 %v893, %v896
    %v899 = vadd.f32 %v894, %v896
    %s900 = scalar_lea.vmem %s1, 96
    %v901 = vld [vmem:[%s900] sm:$0xff]
    %v902 = vld [vmem:[%s900 + $0x8] sm:$0xff]
    %v903 = vld [vmem:[%s900 + $0x10] sm:$0xff]
    %v904 = vld [vmem:[%s900 + $0x18] sm:$0xff]
    %s905 = scalar_lea.vmem %s2, 3
    %v906 = vld [vmem:[%s905] sm:$0x1]
    %v908 = vperm.slane %v906, 0
    %v911 = vsel %vm103, %v898, 0
    %v914 = vsel %vm103, %v899, 0
    %916 = vmatpush.msra.mxu0 0.0
    %917 = vmatpush.msra.mxu0 0.0
    %918 = vmatpush.msra.mxu0 0.0
    %919 = vmatpush.msra.mxu0 0.0
    %920 = vmatpush.msra.mxu0 0.0
    %921 = vmatpush.msra.mxu0 0.0
    %922 = vmatpush.msra.mxu0 0.0
    %923 = vmatpush.msra.mxu0 0.0
    %924 = vmatpush.msra.mxu0 0.0
    %925 = vmatpush.msra.mxu0 0.0
    %926 = vmatpush.msra.mxu0 0.0
    %927 = vmatpush.msra.mxu0 0.0
    %928 = vmatpush.msra.mxu0 %v904
    %929 = vmatpush.msra.mxu0 %v903
    %930 = vmatpush.msra.mxu0 %v902
    %931 = vmatpush.msra.mxu0 %v901
    %932 = vmatmul.f32.gmra.mxu0 %v911
    %v933 = vpop.f32.mrf.mxu0
    %v934 = vadd.f32 %v908, %v933
    %935 = vmatmul.f32.gmra.mxu0 %v914
    %v936 = vpop.f32.mrf.mxu0
    %v937 = vadd.f32 %v908, %v936
    %938 = vdwg.mxu0
    %s939 = scalar_lea.vmem %s1, 128
    %v940 = vld [vmem:[%s939] sm:$0xff]
    %v941 = vld [vmem:[%s939 + $0x8] sm:$0xff]
    %v942 = vld [vmem:[%s939 + $0x10] sm:$0xff]
    %v943 = vld [vmem:[%s939 + $0x18] sm:$0xff]
    %s944 = scalar_lea.vmem %s2, 4
    %v945 = vld [vmem:[%s944] sm:$0x1]
    %v947 = vperm.slane %v945, 0
    %949 = vmatpush.msra.mxu0 0.0
    %950 = vmatpush.msra.mxu0 0.0
    %951 = vmatpush.msra.mxu0 0.0
    %952 = vmatpush.msra.mxu0 0.0
    %953 = vmatpush.msra.mxu0 0.0
    %954 = vmatpush.msra.mxu0 0.0
    %955 = vmatpush.msra.mxu0 0.0
    %956 = vmatpush.msra.mxu0 0.0
    %957 = vmatpush.msra.mxu0 0.0
    %958 = vmatpush.msra.mxu0 0.0
    %959 = vmatpush.msra.mxu0 0.0
    %960 = vmatpush.msra.mxu0 0.0
    %961 = vmatpush.msra.mxu0 %v943
    %962 = vmatpush.msra.mxu0 %v942
    %963 = vmatpush.msra.mxu0 %v941
    %964 = vmatpush.msra.mxu0 %v940
    %965 = vmatmul.f32.gmra.mxu0 %v911
    %v966 = vpop.f32.mrf.mxu0
    %v967 = vadd.f32 %v947, %v966
    %968 = vmatmul.f32.gmra.mxu0 %v914
    %v969 = vpop.f32.mrf.mxu0
    %v970 = vadd.f32 %v947, %v969
    %971 = vdwg.mxu0
    %s972 = scalar_lea.vmem %s1, 160
    %v973 = vld [vmem:[%s972] sm:$0xff]
    %v974 = vld [vmem:[%s972 + $0x8] sm:$0xff]
    %v975 = vld [vmem:[%s972 + $0x10] sm:$0xff]
    %v976 = vld [vmem:[%s972 + $0x18] sm:$0xff]
    %s977 = scalar_lea.vmem %s2, 5
    %v978 = vld [vmem:[%s977] sm:$0x1]
    %v980 = vperm.slane %v978, 0
    %982 = vmatpush.msra.mxu0 0.0
    %983 = vmatpush.msra.mxu0 0.0
    %984 = vmatpush.msra.mxu0 0.0
    %985 = vmatpush.msra.mxu0 0.0
    %986 = vmatpush.msra.mxu0 0.0
    %987 = vmatpush.msra.mxu0 0.0
    %988 = vmatpush.msra.mxu0 0.0
    %989 = vmatpush.msra.mxu0 0.0
    %990 = vmatpush.msra.mxu0 0.0
    %991 = vmatpush.msra.mxu0 0.0
    %992 = vmatpush.msra.mxu0 0.0
    %993 = vmatpush.msra.mxu0 0.0
    %994 = vmatpush.msra.mxu0 %v976
    %995 = vmatpush.msra.mxu0 %v975
    %996 = vmatpush.msra.mxu0 %v974
    %997 = vmatpush.msra.mxu0 %v973
    %998 = vmatmul.f32.gmra.mxu0 %v911
    %v999 = vpop.f32.mrf.mxu0
    %v1000 = vadd.f32 %v980, %v999
    %1001 = vmatmul.f32.gmra.mxu0 %v914
    %v1002 = vpop.f32.mrf.mxu0
    %v1003 = vadd.f32 %v980, %v1002
    %1004 = vdwg.mxu0
    %v1005 = vmul.f32 %v934, %v967
    %v1006 = vmul.f32 %v934, %v970
    %v1007 = vmul.f32 %v937, %v967
    %v1008 = vmul.f32 %v937, %v970
    %v1010 = vsel %vm103, %v1005, 0
    %v1013 = vsel %vm103, %v1006, 0
    %v1016 = vsel %vm103, %v1007, 0
    %v1019 = vsel %vm103, %v1008, 0
    %1021 = vmatpush.msra.mxu0 0.0
    %1022 = vmatpush.msra.mxu0 0.0
    %1023 = vmatpush.msra.mxu0 0.0
    %1024 = vmatpush.msra.mxu0 0.0
    %1025 = vmatpush.msra.mxu0 0.0
    %1026 = vmatpush.msra.mxu0 0.0
    %1027 = vmatpush.msra.mxu0 0.0
    %1028 = vmatpush.msra.mxu0 0.0
    %1029 = vmatpush.msra.mxu0 0.0
    %1030 = vmatpush.msra.mxu0 0.0
    %1031 = vmatpush.msra.mxu0 0.0
    %1032 = vmatpush.msra.mxu0 0.0
    %1033 = vmatpush.msra.mxu0 %v85
    %1034 = vmatpush.msra.mxu0 %v84
    %1035 = vmatpush.msra.mxu0 %v83
    %1036 = vmatpush.msra.mxu0 %v82
    %1037 = vmatmul.f32.gmra.mxu0 %v1010
    %v1038 = vpop.f32.mrf.mxu0
    %v1039 = vadd.f32 0.0, %v1038
    %1040 = vmatmul.f32.gmra.mxu0 %v1013
    %v1041 = vpop.f32.mrf.mxu0
    %v1042 = vadd.f32 0.0, %v1041
    %1043 = vmatmul.f32.gmra.mxu0 %v1016
    %v1044 = vpop.f32.mrf.mxu0
    %v1045 = vadd.f32 0.0, %v1044
    %1046 = vmatmul.f32.gmra.mxu0 %v1019
    %v1047 = vpop.f32.mrf.mxu0
    %v1048 = vadd.f32 0.0, %v1047
    %1049 = vdwg.mxu0
    %v1050 = vsel %vm244, %v1039, -inf
    %v1051 = vsel %vm244, %v1042, -inf
    %v1052 = vmax.f32 %v1050, %v1051
    %v1053 = vsel %vm244, %v1045, -inf
    %v1054 = vsel %vm244, %v1048, -inf
    %v1055 = vmax.f32 %v1053, %v1054
    %v1056 = vsub.f32 %v1039, %v1052
    %v1057 = vsub.f32 %v1042, %v1052
    %v1058 = vsub.f32 %v1045, %v1055
    %v1059 = vsub.f32 %v1048, %v1055
    %v1060 = vmul.f32 %v1056, 1.442695
    %v1061 = vpow.pop %v1060
    %v1062 = vmul.f32 %v1057, 1.442695
    %v1063 = vpow.pop %v1062
    %v1064 = vmul.f32 %v1058, 1.442695
    %v1065 = vpow.pop %v1064
    %v1066 = vmul.f32 %v1059, 1.442695
    %v1067 = vpow.pop %v1066
    %v1068 = vsel %vm244, %v1061, 0.0
    %v1069 = vsel %vm244, %v1063, 0.0
    %v1070 = vadd.f32 %v1068, %v1069
    %v1071 = vsel %vm244, %v1065, 0.0
    %v1072 = vsel %vm244, %v1067, 0.0
    %v1073 = vadd.f32 %v1071, %v1072
    %v1074 = vrcp.pop %v1070
    %v1075 = vrcp.pop %v1073
    %v1076 = vmul.f32 %v1061, %v1074
    %v1077 = vmul.f32 %v1063, %v1074
    %v1078 = vmul.f32 %v1065, %v1075
    %v1079 = vmul.f32 %v1067, %v1075
    %v1081 = vsel %vm244, %v1076, 0
    %v1084 = vsel %vm244, %v1077, 0
    %v1087 = vsel %vm244, %v1078, 0
    %v1090 = vsel %vm244, %v1079, 0
    %1092 = vmatpush.msra.mxu0 0.0
    %1093 = vmatpush.msra.mxu0 0.0
    %1094 = vmatpush.msra.mxu0 0.0
    %1095 = vmatpush.msra.mxu0 0.0
    %1096 = vmatpush.msra.mxu0 0.0
    %1097 = vmatpush.msra.mxu0 0.0
    %1098 = vmatpush.msra.mxu0 0.0
    %1099 = vmatpush.msra.mxu0 0.0
    %1100 = vmatpush.msra.mxu0 0.0
    %1101 = vmatpush.msra.mxu0 0.0
    %1102 = vmatpush.msra.mxu0 0.0
    %1103 = vmatpush.msra.mxu0 0.0
    %1104 = vmatpush.msra.mxu0 0.0
    %1105 = vmatpush.msra.mxu0 0.0
    %1106 = vmatpush.msra.mxu0 0.0
    %1107 = vmatpush.msra.mxu0 %v289
    %1108 = vmatmul.f32.gmra.mxu0 %v1081
    %v1109 = vpop.f32.mrf.mxu0
    %v1110 = vadd.f32 0.0, %v1109
    %1111 = vmatmul.f32.gmra.mxu0 %v1084
    %v1112 = vpop.f32.mrf.mxu0
    %v1113 = vadd.f32 0.0, %v1112
    %1114 = vmatmul.f32.gmra.mxu0 %v1087
    %v1115 = vpop.f32.mrf.mxu0
    %v1116 = vadd.f32 0.0, %v1115
    %1117 = vmatmul.f32.gmra.mxu0 %v1090
    %v1118 = vpop.f32.mrf.mxu0
    %v1119 = vadd.f32 0.0, %v1118
    %1120 = vdwg.mxu0
    %v1121 = vmul.f32 %v1110, %v1000
    %v1122 = vmul.f32 %v1113, %v1003
    %v1123 = vmul.f32 %v1116, %v1000
    %v1124 = vmul.f32 %v1119, %v1003
    %v1125 = vsel %vm103, %v1121, 0.0
    %v1126 = vsel %vm103, %v1122, 0.0
    %v1127 = vadd.f32 %v1125, %v1126
    %v1128 = vsel %vm103, %v1123, 0.0
    %v1129 = vsel %vm103, %v1124, 0.0
    %v1130 = vadd.f32 %v1128, %v1129
    %s1131 = scalar_lea.vmem %s3, 32
    %v1132 = vld [vmem:[%s1131] sm:$0xff]
    %v1133 = vld [vmem:[%s1131 + $0x8] sm:$0xff]
    %v1134 = vld [vmem:[%s1131 + $0x10] sm:$0xff]
    %v1135 = vld [vmem:[%s1131 + $0x18] sm:$0xff]
    %s1136 = scalar_lea.vmem %s4, 1
    %v1137 = vld [vmem:[%s1136] sm:$0x1]
    %v1139 = vperm.slane %v1137, 0
    %v1142 = vsel %vm103, %v1127, 0
    %v1145 = vsel %vm103, %v1130, 0
    %1147 = vmatpush.msra.mxu0 0.0
    %1148 = vmatpush.msra.mxu0 0.0
    %1149 = vmatpush.msra.mxu0 0.0
    %1150 = vmatpush.msra.mxu0 0.0
    %1151 = vmatpush.msra.mxu0 0.0
    %1152 = vmatpush.msra.mxu0 0.0
    %1153 = vmatpush.msra.mxu0 0.0
    %1154 = vmatpush.msra.mxu0 0.0
    %1155 = vmatpush.msra.mxu0 0.0
    %1156 = vmatpush.msra.mxu0 0.0
    %1157 = vmatpush.msra.mxu0 0.0
    %1158 = vmatpush.msra.mxu0 0.0
    %1159 = vmatpush.msra.mxu0 %v1135
    %1160 = vmatpush.msra.mxu0 %v1134
    %1161 = vmatpush.msra.mxu0 %v1133
    %1162 = vmatpush.msra.mxu0 %v1132
    %1163 = vmatmul.f32.gmra.mxu0 %v1142
    %v1164 = vpop.f32.mrf.mxu0
    %v1165 = vadd.f32 %v1139, %v1164
    %1166 = vmatmul.f32.gmra.mxu0 %v1145
    %v1167 = vpop.f32.mrf.mxu0
    %v1168 = vadd.f32 %v1139, %v1167
    %1169 = vdwg.mxu0
    %v1170 = vadd.f32 %v898, %v1165
    %v1171 = vadd.f32 %v899, %v1168
    %s1172 = scalar_lea.vmem %s13, 3
    %v1173 = vld [vmem:[%s1172] sm:$0x1]
    %s1174 = scalar_lea.vmem %s14, 3
    %v1175 = vld [vmem:[%s1174] sm:$0x1]
    %v1176 = vsel %vm103, %v1170, 0.0
    %1177 = vadd.xlane.f32.xlu0 %v1176
    %v1178 = vpop.xlane.xlu0 %1177
    %v1179 = vsel %vm103, %v1171, 0.0
    %1180 = vadd.xlane.f32.xlu0 %v1179
    %v1181 = vpop.xlane.xlu0 %1180
    %v1182 = vmul.f32 %v1178, %v383
    %v1183 = vmul.f32 %v1181, %v383
    %v1184 = vsub.f32 %v1170, %v1182
    %v1185 = vsub.f32 %v1171, %v1183
    %v1186 = vmul.f32 %v1184, %v1184
    %v1187 = vmul.f32 %v1185, %v1185
    %v1188 = vsel %vm103, %v1186, 0.0
    %1189 = vadd.xlane.f32.xlu0 %v1188
    %v1190 = vpop.xlane.xlu0 %1189
    %v1191 = vsel %vm103, %v1187, 0.0
    %1192 = vadd.xlane.f32.xlu0 %v1191
    %v1193 = vpop.xlane.xlu0 %1192
    %v1194 = vmul.f32 %v1190, %v383
    %v1195 = vmul.f32 %v1193, %v383
    %v1196 = vadd.f32 %v1194, 1e-05
    %v1197 = vadd.f32 %v1195, 1e-05
    %v1198 = vrsqrt.pop %v1196
    %v1199 = vmul.f32 %v1198, %v1196
    %v1200 = vmul.f32 %v1199, %v1198
    %v1201 = vmul.f32 0.5, %v1200
    %v1202 = vsub.f32 1.5, %v1201
    %v1203 = vmul.f32 %v1198, %v1202
    %vm1204 = vweird.f32 %v1196
    %vm1205 = vweird.f32 %v1198
    %vm1206 = vmor %vm1204, %vm1205
    %v1207 = vsel %vm1206, %v1198, %v1203
    %v1208 = vrsqrt.pop %v1197
    %v1209 = vmul.f32 %v1208, %v1197
    %v1210 = vmul.f32 %v1209, %v1208
    %v1211 = vmul.f32 0.5, %v1210
    %v1212 = vsub.f32 1.5, %v1211
    %v1213 = vmul.f32 %v1208, %v1212
    %vm1214 = vweird.f32 %v1197
    %vm1215 = vweird.f32 %v1208
    %vm1216 = vmor %vm1214, %vm1215
    %v1217 = vsel %vm1216, %v1208, %v1213
    %v1218 = vmul.f32 %v1184, %v1207
    %v1219 = vmul.f32 %v1185, %v1217
    %v1221 = vperm.slane %v1173, 0
    %v1223 = vmul.f32 %v1218, %v1221
    %v1224 = vmul.f32 %v1219, %v1221
    %v1226 = vperm.slane %v1175, 0
    %v1228 = vadd.f32 %v1223, %v1226
    %v1229 = vadd.f32 %v1224, %v1226
    %s1230 = scalar_lea.vmem %s5, 96
    %v1231 = vld [vmem:[%s1230] sm:$0xff]
    %v1232 = vld [vmem:[%s1230 + $0x8] sm:$0xff]
    %v1233 = vld [vmem:[%s1230 + $0x10] sm:$0xff]
    %v1234 = vld [vmem:[%s1230 + $0x18] sm:$0xff]
    %s1235 = scalar_lea.vmem %s6, 3
    %v1236 = vld [vmem:[%s1235] sm:$0x1]
    %v1238 = vperm.slane %v1236, 0
    %v1241 = vsel %vm103, %v1228, 0
    %v1244 = vsel %vm103, %v1229, 0
    %1246 = vmatpush.msra.mxu0 0.0
    %1247 = vmatpush.msra.mxu0 0.0
    %1248 = vmatpush.msra.mxu0 0.0
    %1249 = vmatpush.msra.mxu0 0.0
    %1250 = vmatpush.msra.mxu0 0.0
    %1251 = vmatpush.msra.mxu0 0.0
    %1252 = vmatpush.msra.mxu0 0.0
    %1253 = vmatpush.msra.mxu0 0.0
    %1254 = vmatpush.msra.mxu0 0.0
    %1255 = vmatpush.msra.mxu0 0.0
    %1256 = vmatpush.msra.mxu0 0.0
    %1257 = vmatpush.msra.mxu0 0.0
    %1258 = vmatpush.msra.mxu0 %v1234
    %1259 = vmatpush.msra.mxu0 %v1233
    %1260 = vmatpush.msra.mxu0 %v1232
    %1261 = vmatpush.msra.mxu0 %v1231
    %1262 = vmatmul.f32.gmra.mxu0 %v1241
    %v1263 = vpop.f32.mrf.mxu0
    %v1264 = vadd.f32 %v1238, %v1263
    %1265 = vmatmul.f32.gmra.mxu0 %v1244
    %v1266 = vpop.f32.mrf.mxu0
    %v1267 = vadd.f32 %v1238, %v1266
    %1268 = vdwg.mxu0
    %s1269 = scalar_lea.vmem %s5, 128
    %v1270 = vld [vmem:[%s1269] sm:$0xff]
    %v1271 = vld [vmem:[%s1269 + $0x8] sm:$0xff]
    %v1272 = vld [vmem:[%s1269 + $0x10] sm:$0xff]
    %v1273 = vld [vmem:[%s1269 + $0x18] sm:$0xff]
    %s1274 = scalar_lea.vmem %s6, 4
    %v1275 = vld [vmem:[%s1274] sm:$0x1]
    %v1277 = vperm.slane %v1275, 0
    %1279 = vmatpush.msra.mxu0 0.0
    %1280 = vmatpush.msra.mxu0 0.0
    %1281 = vmatpush.msra.mxu0 0.0
    %1282 = vmatpush.msra.mxu0 0.0
    %1283 = vmatpush.msra.mxu0 0.0
    %1284 = vmatpush.msra.mxu0 0.0
    %1285 = vmatpush.msra.mxu0 0.0
    %1286 = vmatpush.msra.mxu0 0.0
    %1287 = vmatpush.msra.mxu0 0.0
    %1288 = vmatpush.msra.mxu0 0.0
    %1289 = vmatpush.msra.mxu0 0.0
    %1290 = vmatpush.msra.mxu0 0.0
    %1291 = vmatpush.msra.mxu0 %v1273
    %1292 = vmatpush.msra.mxu0 %v1272
    %1293 = vmatpush.msra.mxu0 %v1271
    %1294 = vmatpush.msra.mxu0 %v1270
    %1295 = vmatmul.f32.gmra.mxu0 %v105
    %v1296 = vpop.f32.mrf.mxu0
    %v1297 = vadd.f32 %v1277, %v1296
    %1298 = vmatmul.f32.gmra.mxu0 %v108
    %v1299 = vpop.f32.mrf.mxu0
    %v1300 = vadd.f32 %v1277, %v1299
    %1301 = vdwg.mxu0
    %s1302 = scalar_lea.vmem %s5, 160
    %v1303 = vld [vmem:[%s1302] sm:$0xff]
    %v1304 = vld [vmem:[%s1302 + $0x8] sm:$0xff]
    %v1305 = vld [vmem:[%s1302 + $0x10] sm:$0xff]
    %v1306 = vld [vmem:[%s1302 + $0x18] sm:$0xff]
    %s1307 = scalar_lea.vmem %s6, 5
    %v1308 = vld [vmem:[%s1307] sm:$0x1]
    %v1310 = vperm.slane %v1308, 0
    %1312 = vmatpush.msra.mxu0 0.0
    %1313 = vmatpush.msra.mxu0 0.0
    %1314 = vmatpush.msra.mxu0 0.0
    %1315 = vmatpush.msra.mxu0 0.0
    %1316 = vmatpush.msra.mxu0 0.0
    %1317 = vmatpush.msra.mxu0 0.0
    %1318 = vmatpush.msra.mxu0 0.0
    %1319 = vmatpush.msra.mxu0 0.0
    %1320 = vmatpush.msra.mxu0 0.0
    %1321 = vmatpush.msra.mxu0 0.0
    %1322 = vmatpush.msra.mxu0 0.0
    %1323 = vmatpush.msra.mxu0 0.0
    %1324 = vmatpush.msra.mxu0 %v1306
    %1325 = vmatpush.msra.mxu0 %v1305
    %1326 = vmatpush.msra.mxu0 %v1304
    %1327 = vmatpush.msra.mxu0 %v1303
    %1328 = vmatmul.f32.gmra.mxu0 %v105
    %v1329 = vpop.f32.mrf.mxu0
    %v1330 = vadd.f32 %v1310, %v1329
    %1331 = vmatmul.f32.gmra.mxu0 %v108
    %v1332 = vpop.f32.mrf.mxu0
    %v1333 = vadd.f32 %v1310, %v1332
    %1334 = vdwg.mxu0
    %v1335 = vmul.f32 %v1264, %v1297
    %v1336 = vmul.f32 %v1264, %v1300
    %v1337 = vmul.f32 %v1267, %v1297
    %v1338 = vmul.f32 %v1267, %v1300
    %v1340 = vsel %vm103, %v1335, 0
    %v1343 = vsel %vm103, %v1336, 0
    %v1346 = vsel %vm103, %v1337, 0
    %v1349 = vsel %vm103, %v1338, 0
    %1351 = vmatpush.msra.mxu0 0.0
    %1352 = vmatpush.msra.mxu0 0.0
    %1353 = vmatpush.msra.mxu0 0.0
    %1354 = vmatpush.msra.mxu0 0.0
    %1355 = vmatpush.msra.mxu0 0.0
    %1356 = vmatpush.msra.mxu0 0.0
    %1357 = vmatpush.msra.mxu0 0.0
    %1358 = vmatpush.msra.mxu0 0.0
    %1359 = vmatpush.msra.mxu0 0.0
    %1360 = vmatpush.msra.mxu0 0.0
    %1361 = vmatpush.msra.mxu0 0.0
    %1362 = vmatpush.msra.mxu0 0.0
    %1363 = vmatpush.msra.mxu0 %v85
    %1364 = vmatpush.msra.mxu0 %v84
    %1365 = vmatpush.msra.mxu0 %v83
    %1366 = vmatpush.msra.mxu0 %v82
    %1367 = vmatmul.f32.gmra.mxu0 %v1340
    %v1368 = vpop.f32.mrf.mxu0
    %v1369 = vadd.f32 0.0, %v1368
    %1370 = vmatmul.f32.gmra.mxu0 %v1343
    %v1371 = vpop.f32.mrf.mxu0
    %v1372 = vadd.f32 0.0, %v1371
    %1373 = vmatmul.f32.gmra.mxu0 %v1346
    %v1374 = vpop.f32.mrf.mxu0
    %v1375 = vadd.f32 0.0, %v1374
    %1376 = vmatmul.f32.gmra.mxu0 %v1349
    %v1377 = vpop.f32.mrf.mxu0
    %v1378 = vadd.f32 0.0, %v1377
    %1379 = vdwg.mxu0
    %v1380 = vsel %vm244, %v1369, -inf
    %v1381 = vsel %vm244, %v1372, -inf
    %v1382 = vmax.f32 %v1380, %v1381
    %v1383 = vsel %vm244, %v1375, -inf
    %v1384 = vsel %vm244, %v1378, -inf
    %v1385 = vmax.f32 %v1383, %v1384
    %v1386 = vsub.f32 %v1369, %v1382
    %v1387 = vsub.f32 %v1372, %v1382
    %v1388 = vsub.f32 %v1375, %v1385
    %v1389 = vsub.f32 %v1378, %v1385
    %v1390 = vmul.f32 %v1386, 1.442695
    %v1391 = vpow.pop %v1390
    %v1392 = vmul.f32 %v1387, 1.442695
    %v1393 = vpow.pop %v1392
    %v1394 = vmul.f32 %v1388, 1.442695
    %v1395 = vpow.pop %v1394
    %v1396 = vmul.f32 %v1389, 1.442695
    %v1397 = vpow.pop %v1396
    %v1398 = vsel %vm244, %v1391, 0.0
    %v1399 = vsel %vm244, %v1393, 0.0
    %v1400 = vadd.f32 %v1398, %v1399
    %v1401 = vsel %vm244, %v1395, 0.0
    %v1402 = vsel %vm244, %v1397, 0.0
    %v1403 = vadd.f32 %v1401, %v1402
    %v1404 = vrcp.pop %v1400
    %v1405 = vrcp.pop %v1403
    %v1406 = vmul.f32 %v1391, %v1404
    %v1407 = vmul.f32 %v1393, %v1404
    %v1408 = vmul.f32 %v1395, %v1405
    %v1409 = vmul.f32 %v1397, %v1405
    %v1411 = vsel %vm244, %v1406, 0
    %v1414 = vsel %vm244, %v1407, 0
    %v1417 = vsel %vm244, %v1408, 0
    %v1420 = vsel %vm244, %v1409, 0
    %1422 = vmatpush.msra.mxu0 0.0
    %1423 = vmatpush.msra.mxu0 0.0
    %1424 = vmatpush.msra.mxu0 0.0
    %1425 = vmatpush.msra.mxu0 0.0
    %1426 = vmatpush.msra.mxu0 0.0
    %1427 = vmatpush.msra.mxu0 0.0
    %1428 = vmatpush.msra.mxu0 0.0
    %1429 = vmatpush.msra.mxu0 0.0
    %1430 = vmatpush.msra.mxu0 0.0
    %1431 = vmatpush.msra.mxu0 0.0
    %1432 = vmatpush.msra.mxu0 0.0
    %1433 = vmatpush.msra.mxu0 0.0
    %1434 = vmatpush.msra.mxu0 0.0
    %1435 = vmatpush.msra.mxu0 0.0
    %1436 = vmatpush.msra.mxu0 0.0
    %1437 = vmatpush.msra.mxu0 %v289
    %1438 = vmatmul.f32.gmra.mxu0 %v1411
    %v1439 = vpop.f32.mrf.mxu0
    %v1440 = vadd.f32 0.0, %v1439
    %1441 = vmatmul.f32.gmra.mxu0 %v1414
    %v1442 = vpop.f32.mrf.mxu0
    %v1443 = vadd.f32 0.0, %v1442
    %1444 = vmatmul.f32.gmra.mxu0 %v1417
    %v1445 = vpop.f32.mrf.mxu0
    %v1446 = vadd.f32 0.0, %v1445
    %1447 = vmatmul.f32.gmra.mxu0 %v1420
    %v1448 = vpop.f32.mrf.mxu0
    %v1449 = vadd.f32 0.0, %v1448
    %1450 = vdwg.mxu0
    %v1451 = vmul.f32 %v1440, %v1330
    %v1452 = vmul.f32 %v1443, %v1333
    %v1453 = vmul.f32 %v1446, %v1330
    %v1454 = vmul.f32 %v1449, %v1333
    %v1455 = vsel %vm103, %v1451, 0.0
    %v1456 = vsel %vm103, %v1452, 0.0
    %v1457 = vadd.f32 %v1455, %v1456
    %v1458 = vsel %vm103, %v1453, 0.0
    %v1459 = vsel %vm103, %v1454, 0.0
    %v1460 = vadd.f32 %v1458, %v1459
    %s1461 = scalar_lea.vmem %s7, 32
    %v1462 = vld [vmem:[%s1461] sm:$0xff]
    %v1463 = vld [vmem:[%s1461 + $0x8] sm:$0xff]
    %v1464 = vld [vmem:[%s1461 + $0x10] sm:$0xff]
    %v1465 = vld [vmem:[%s1461 + $0x18] sm:$0xff]
    %s1466 = scalar_lea.vmem %s8, 1
    %v1467 = vld [vmem:[%s1466] sm:$0x1]
    %v1469 = vperm.slane %v1467, 0
    %v1472 = vsel %vm103, %v1457, 0
    %v1475 = vsel %vm103, %v1460, 0
    %1477 = vmatpush.msra.mxu0 0.0
    %1478 = vmatpush.msra.mxu0 0.0
    %1479 = vmatpush.msra.mxu0 0.0
    %1480 = vmatpush.msra.mxu0 0.0
    %1481 = vmatpush.msra.mxu0 0.0
    %1482 = vmatpush.msra.mxu0 0.0
    %1483 = vmatpush.msra.mxu0 0.0
    %1484 = vmatpush.msra.mxu0 0.0
    %1485 = vmatpush.msra.mxu0 0.0
    %1486 = vmatpush.msra.mxu0 0.0
    %1487 = vmatpush.msra.mxu0 0.0
    %1488 = vmatpush.msra.mxu0 0.0
    %1489 = vmatpush.msra.mxu0 %v1465
    %1490 = vmatpush.msra.mxu0 %v1464
    %1491 = vmatpush.msra.mxu0 %v1463
    %1492 = vmatpush.msra.mxu0 %v1462
    %1493 = vmatmul.f32.gmra.mxu0 %v1472
    %v1494 = vpop.f32.mrf.mxu0
    %v1495 = vadd.f32 %v1469, %v1494
    %1496 = vmatmul.f32.gmra.mxu0 %v1475
    %v1497 = vpop.f32.mrf.mxu0
    %v1498 = vadd.f32 %v1469, %v1497
    %1499 = vdwg.mxu0
    %v1500 = vadd.f32 %v1228, %v1495
    %v1501 = vadd.f32 %v1229, %v1498
    %s1502 = scalar_lea.vmem %s13, 4
    %v1503 = vld [vmem:[%s1502] sm:$0x1]
    %s1504 = scalar_lea.vmem %s14, 4
    %v1505 = vld [vmem:[%s1504] sm:$0x1]
    %v1506 = vsel %vm103, %v1500, 0.0
    %1507 = vadd.xlane.f32.xlu0 %v1506
    %v1508 = vpop.xlane.xlu0 %1507
    %v1509 = vsel %vm103, %v1501, 0.0
    %1510 = vadd.xlane.f32.xlu0 %v1509
    %v1511 = vpop.xlane.xlu0 %1510
    %v1512 = vmul.f32 %v1508, %v383
    %v1513 = vmul.f32 %v1511, %v383
    %v1514 = vsub.f32 %v1500, %v1512
    %v1515 = vsub.f32 %v1501, %v1513
    %v1516 = vmul.f32 %v1514, %v1514
    %v1517 = vmul.f32 %v1515, %v1515
    %v1518 = vsel %vm103, %v1516, 0.0
    %1519 = vadd.xlane.f32.xlu0 %v1518
    %v1520 = vpop.xlane.xlu0 %1519
    %v1521 = vsel %vm103, %v1517, 0.0
    %1522 = vadd.xlane.f32.xlu0 %v1521
    %v1523 = vpop.xlane.xlu0 %1522
    %v1524 = vmul.f32 %v1520, %v383
    %v1525 = vmul.f32 %v1523, %v383
    %v1526 = vadd.f32 %v1524, 1e-05
    %v1527 = vadd.f32 %v1525, 1e-05
    %v1528 = vrsqrt.pop %v1526
    %v1529 = vmul.f32 %v1528, %v1526
    %v1530 = vmul.f32 %v1529, %v1528
    %v1531 = vmul.f32 0.5, %v1530
    %v1532 = vsub.f32 1.5, %v1531
    %v1533 = vmul.f32 %v1528, %v1532
    %vm1534 = vweird.f32 %v1526
    %vm1535 = vweird.f32 %v1528
    %vm1536 = vmor %vm1534, %vm1535
    %v1537 = vsel %vm1536, %v1528, %v1533
    %v1538 = vrsqrt.pop %v1527
    %v1539 = vmul.f32 %v1538, %v1527
    %v1540 = vmul.f32 %v1539, %v1538
    %v1541 = vmul.f32 0.5, %v1540
    %v1542 = vsub.f32 1.5, %v1541
    %v1543 = vmul.f32 %v1538, %v1542
    %vm1544 = vweird.f32 %v1527
    %vm1545 = vweird.f32 %v1538
    %vm1546 = vmor %vm1544, %vm1545
    %v1547 = vsel %vm1546, %v1538, %v1543
    %v1548 = vmul.f32 %v1514, %v1537
    %v1549 = vmul.f32 %v1515, %v1547
    %v1551 = vperm.slane %v1503, 0
    %v1553 = vmul.f32 %v1548, %v1551
    %v1554 = vmul.f32 %v1549, %v1551
    %v1556 = vperm.slane %v1505, 0
    %v1558 = vadd.f32 %v1553, %v1556
    %v1559 = vadd.f32 %v1554, %v1556
    %s1560 = scalar_lea.vmem %s9, 32
    %v1561 = vld [vmem:[%s1560] sm:$0xff]
    %v1562 = vld [vmem:[%s1560 + $0x8] sm:$0xff]
    %v1563 = vld [vmem:[%s1560 + $0x10] sm:$0xff]
    %v1564 = vld [vmem:[%s1560 + $0x18] sm:$0xff]
    %s1565 = scalar_lea.vmem %s10, 1
    %v1566 = vld [vmem:[%s1565] sm:$0x1]
    %v1568 = vperm.slane %v1566, 0
    %v1571 = vsel %vm103, %v1558, 0
    %v1574 = vsel %vm103, %v1559, 0
    %1576 = vmatpush.msra.mxu0 0.0
    %1577 = vmatpush.msra.mxu0 0.0
    %1578 = vmatpush.msra.mxu0 0.0
    %1579 = vmatpush.msra.mxu0 0.0
    %1580 = vmatpush.msra.mxu0 0.0
    %1581 = vmatpush.msra.mxu0 0.0
    %1582 = vmatpush.msra.mxu0 0.0
    %1583 = vmatpush.msra.mxu0 0.0
    %1584 = vmatpush.msra.mxu0 0.0
    %1585 = vmatpush.msra.mxu0 0.0
    %1586 = vmatpush.msra.mxu0 0.0
    %1587 = vmatpush.msra.mxu0 0.0
    %1588 = vmatpush.msra.mxu0 %v1564
    %1589 = vmatpush.msra.mxu0 %v1563
    %1590 = vmatpush.msra.mxu0 %v1562
    %1591 = vmatpush.msra.mxu0 %v1561
    %1592 = vmatmul.f32.gmra.mxu0 %v1571
    %v1593 = vpop.f32.mrf.mxu0
    %v1594 = vadd.f32 %v1568, %v1593
    %1595 = vmatmul.f32.gmra.mxu0 %v1574
    %v1596 = vpop.f32.mrf.mxu0
    %v1597 = vadd.f32 %v1568, %v1596
    %1598 = vdwg.mxu0
    %v1599 = vmax.f32 %v1594, 0.0
    %v1600 = vmax.f32 %v1597, 0.0
    %s1601 = scalar_lea.vmem %s11, 128
    %v1602 = vld [vmem:[%s1601] sm:$0xff]
    %v1603 = vld [vmem:[%s1601 + $0x8] sm:$0xff]
    %v1604 = vld [vmem:[%s1601 + $0x10] sm:$0xff]
    %v1605 = vld [vmem:[%s1601 + $0x18] sm:$0xff]
    %v1606 = vld [vmem:[%s1601 + $0x20] sm:$0xff]
    %v1607 = vld [vmem:[%s1601 + $0x28] sm:$0xff]
    %v1608 = vld [vmem:[%s1601 + $0x30] sm:$0xff]
    %v1609 = vld [vmem:[%s1601 + $0x38] sm:$0xff]
    %v1610 = vld [vmem:[%s1601 + $0x40] sm:$0xff]
    %v1611 = vld [vmem:[%s1601 + $0x48] sm:$0xff]
    %v1612 = vld [vmem:[%s1601 + $0x50] sm:$0xff]
    %v1613 = vld [vmem:[%s1601 + $0x58] sm:$0xff]
    %v1614 = vld [vmem:[%s1601 + $0x60] sm:$0xff]
    %v1615 = vld [vmem:[%s1601 + $0x68] sm:$0xff]
    %v1616 = vld [vmem:[%s1601 + $0x70] sm:$0xff]
    %v1617 = vld [vmem:[%s1601 + $0x78] sm:$0xff]
    %s1618 = scalar_lea.vmem %s12, 1
    %v1619 = vld [vmem:[%s1618] sm:$0x1]
    %v1621 = vperm.slane %v1619, 0
    %1623 = vmatpush.msra.mxu0 %v1617
    %1624 = vmatpush.msra.mxu0 %v1616
    %1625 = vmatpush.msra.mxu0 %v1615
    %1626 = vmatpush.msra.mxu0 %v1614
    %1627 = vmatpush.msra.mxu0 %v1613
    %1628 = vmatpush.msra.mxu0 %v1612
    %1629 = vmatpush.msra.mxu0 %v1611
    %1630 = vmatpush.msra.mxu0 %v1610
    %1631 = vmatpush.msra.mxu0 %v1609
    %1632 = vmatpush.msra.mxu0 %v1608
    %1633 = vmatpush.msra.mxu0 %v1607
    %1634 = vmatpush.msra.mxu0 %v1606
    %1635 = vmatpush.msra.mxu0 %v1605
    %1636 = vmatpush.msra.mxu0 %v1604
    %1637 = vmatpush.msra.mxu0 %v1603
    %1638 = vmatpush.msra.mxu0 %v1602
    %1639 = vmatmul.f32.gmra.mxu0 %v1599
    %v1640 = vpop.f32.mrf.mxu0
    %v1641 = vadd.f32 %v1621, %v1640
    %1642 = vmatmul.f32.gmra.mxu0 %v1600
    %v1643 = vpop.f32.mrf.mxu0
    %v1644 = vadd.f32 %v1621, %v1643
    %1645 = vdwg.mxu0
    %v1646 = vadd.f32 %v1558, %v1641
    %v1647 = vadd.f32 %v1559, %v1644
    %s1648 = scalar_lea.vmem %s13, 5
    %v1649 = vld [vmem:[%s1648] sm:$0x1]
    %s1650 = scalar_lea.vmem %s14, 5
    %v1651 = vld [vmem:[%s1650] sm:$0x1]
    %v1652 = vsel %vm103, %v1646, 0.0
    %1653 = vadd.xlane.f32.xlu0 %v1652
    %v1654 = vpop.xlane.xlu0 %1653
    %v1655 = vsel %vm103, %v1647, 0.0
    %1656 = vadd.xlane.f32.xlu0 %v1655
    %v1657 = vpop.xlane.xlu0 %1656
    %v1658 = vmul.f32 %v1654, %v383
    %v1659 = vmul.f32 %v1657, %v383
    %v1660 = vsub.f32 %v1646, %v1658
    %v1661 = vsub.f32 %v1647, %v1659
    %v1662 = vmul.f32 %v1660, %v1660
    %v1663 = vmul.f32 %v1661, %v1661
    %v1664 = vsel %vm103, %v1662, 0.0
    %1665 = vadd.xlane.f32.xlu0 %v1664
    %v1666 = vpop.xlane.xlu0 %1665
    %v1667 = vsel %vm103, %v1663, 0.0
    %1668 = vadd.xlane.f32.xlu0 %v1667
    %v1669 = vpop.xlane.xlu0 %1668
    %v1670 = vmul.f32 %v1666, %v383
    %v1671 = vmul.f32 %v1669, %v383
    %v1672 = vadd.f32 %v1670, 1e-05
    %v1673 = vadd.f32 %v1671, 1e-05
    %v1674 = vrsqrt.pop %v1672
    %v1675 = vmul.f32 %v1674, %v1672
    %v1676 = vmul.f32 %v1675, %v1674
    %v1677 = vmul.f32 0.5, %v1676
    %v1678 = vsub.f32 1.5, %v1677
    %v1679 = vmul.f32 %v1674, %v1678
    %vm1680 = vweird.f32 %v1672
    %vm1681 = vweird.f32 %v1674
    %vm1682 = vmor %vm1680, %vm1681
    %v1683 = vsel %vm1682, %v1674, %v1679
    %v1684 = vrsqrt.pop %v1673
    %v1685 = vmul.f32 %v1684, %v1673
    %v1686 = vmul.f32 %v1685, %v1684
    %v1687 = vmul.f32 0.5, %v1686
    %v1688 = vsub.f32 1.5, %v1687
    %v1689 = vmul.f32 %v1684, %v1688
    %vm1690 = vweird.f32 %v1673
    %vm1691 = vweird.f32 %v1684
    %vm1692 = vmor %vm1690, %vm1691
    %v1693 = vsel %vm1692, %v1684, %v1689
    %v1694 = vmul.f32 %v1660, %v1683
    %v1695 = vmul.f32 %v1661, %v1693
    %v1697 = vperm.slane %v1649, 0
    %v1699 = vmul.f32 %v1694, %v1697
    %v1700 = vmul.f32 %v1695, %v1697
    %v1702 = vperm.slane %v1651, 0
    %v1704 = vadd.f32 %v1699, %v1702
    %v1705 = vadd.f32 %v1700, %v1702
    %v1706 = vld [vmem:[%s15] sm:$0xff]
    %v1707 = vld [vmem:[%s15 + $0x8] sm:$0xff]
    %v1708 = vld [vmem:[%s15 + $0x10] sm:$0xff]
    %v1709 = vld [vmem:[%s15 + $0x18] sm:$0xff]
    %v1710 = vld [vmem:[%s16] sm:$0x1]
    %v1712 = vperm.slane %v1710, 0
    %v1715 = vsel %vm103, %v1704, 0
    %v1718 = vsel %vm103, %v1705, 0
    %1720 = vmatpush.msra.mxu0 0.0
    %1721 = vmatpush.msra.mxu0 0.0
    %1722 = vmatpush.msra.mxu0 0.0
    %1723 = vmatpush.msra.mxu0 0.0
    %1724 = vmatpush.msra.mxu0 0.0
    %1725 = vmatpush.msra.mxu0 0.0
    %1726 = vmatpush.msra.mxu0 0.0
    %1727 = vmatpush.msra.mxu0 0.0
    %1728 = vmatpush.msra.mxu0 0.0
    %1729 = vmatpush.msra.mxu0 0.0
    %1730 = vmatpush.msra.mxu0 0.0
    %1731 = vmatpush.msra.mxu0 0.0
    %1732 = vmatpush.msra.mxu0 %v1709
    %1733 = vmatpush.msra.mxu0 %v1708
    %1734 = vmatpush.msra.mxu0 %v1707
    %1735 = vmatpush.msra.mxu0 %v1706
    %1736 = vmatmul.f32.gmra.mxu0 %v1715
    %v1737 = vpop.f32.mrf.mxu0
    %v1738 = vadd.f32 %v1712, %v1737
    %1739 = vmatmul.f32.gmra.mxu0 %v1718
    %v1740 = vpop.f32.mrf.mxu0
    %v1741 = vadd.f32 %v1712, %v1740
    %1742 = vdwg.mxu0
    %vm1743 = vcmask 130048
    %1744 = vst.msk [vmem:[#allocation2] sm:$0xff] %vm1743, %v1738
    %1745 = vst.msk [vmem:[#allocation2 + $0x8] sm:$0xff] %vm1743, %v1741
    // Predicated region
    $region70: #{decoder_forward.1} parent=1 // pred_check
      _
    $region71: #{decoder_forward.1} parent=1 // pred_check_branch
      %1747 = sbr.rel (0) target = $region73
    $region72: #{decoder_forward.1} parent=1 // pred_region
      %1749 = vsyncadd [#allocation3], 0
      %s1750 = sshll.u32 [#allocation2], 4
      %s1751 = int_to_ptr.vmem [resolvable:$true] %s1750
      %s1752 = sshll.u32 %s17, 4
      %s1753 = int_to_ptr.hbm [resolvable:$true] %s1752
      %1758 = dma.vmem_to_hbm [thread:$0]  %s1751, 256, %s1753, [#allocation3], 128, 128, 8
    $region73: #{decoder_forward.1} parent=1 // pred_fallthru
      _
    // Predicated region
    $region74: #{decoder_forward.1} parent=1 // pred_check
      _
    $region75: #{decoder_forward.1} parent=1 // pred_check_branch
      %1760 = sbr.rel (0) target = $region77
    $region76: #{decoder_forward.1} parent=1 // pred_region
      %1762 = dma.done [#allocation3], 256
    $region77: #{decoder_forward.1} parent=1 // pred_fallthru
      _
    %1763 = vsyncpa [#allocation3], 1

</llo_original>
